<compile_context>
chip_gen: v6e
topology: v6e:2x2x1
jax: 0.10.0
libtpu: 0.0.40
codegen_flags: <defaults>
</compile_context>

<pallas_src>
import jax
import jax.numpy as jnp
from jax import lax
from jax.experimental import pallas as pl
from jax.experimental.pallas import tpu as pltpu

LANE = 128      # TPU lane width: all feature dims are zero-padded to this
SUBLANE = 8


def _round_up(x, m):
    return (x + m - 1) // m * m


# ---------------------------------------------------------------------------
# Pallas kernels
# ---------------------------------------------------------------------------

def _masked_sigmoid(y, m, s, c):
    # LinearMaskedSigmoidOp.forward: sigmoid(y)*(1-mask) + (y*slope+bias)*mask
    # The module's masks are strictly {0,1} (cast of a bool), so a select is
    # exactly equivalent to the blend and cheaper on the VPU.
    sig = pl.reciprocal(1.0 + jnp.exp(-y), approx=True)   # exp + rcp on the EUP
    return jnp.where(m != 0.0, y * s + c, sig)


def _conv_ms_kernel(x_ref, w_ref, b_ref, m_ref, s_ref, c_ref, o_ref):
    # x: (M, K) im2col patches; w: (K, 128); b: (1, 128); m/s/c: (M, 128)
    y = jnp.dot(x_ref[...], w_ref[...], preferred_element_type=jnp.float32)
    y = y + b_ref[...]
    o_ref[...] = _masked_sigmoid(y, m_ref[...], s_ref[...], c_ref[...])


def _head_kernel(x_ref, w3_ref, b3_ref, m3_ref, s3_ref, c3_ref,
                 w4_ref, b4_ref, o_ref):
    # linear1 -> LinearMaskedSigmoid3 -> linear2, all resident in VMEM.
    h = jnp.dot(x_ref[...], w3_ref[...], preferred_element_type=jnp.float32)
    h = h + b3_ref[...]
    a = _masked_sigmoid(h, m3_ref[...], s3_ref[...], c3_ref[...])
    o_ref[...] = (jnp.dot(a, w4_ref[...], preferred_element_type=jnp.float32)
                  + b4_ref[...])


# ---------------------------------------------------------------------------
# pallas_call wrappers (single grid point; everything fits VMEM with margin)
# ---------------------------------------------------------------------------

def _full_spec(shape):
    return pl.BlockSpec(shape, lambda i: (0,) * len(shape))


_ARB = pltpu.CompilerParams(dimension_semantics=("arbitrary",))


def conv_ms(x, w, b, m, s, c):
    """Fused (im2col-matmul + bias + LinearMaskedSigmoid); output is (M, 128)."""
    M, K = x.shape
    F = w.shape[1]
    return pl.pallas_call(
        _conv_ms_kernel,
        out_shape=jax.ShapeDtypeStruct((M, F), jnp.float32),
        grid=(1,),
        in_specs=[_full_spec((M, K)), _full_spec((K, F)), _full_spec((1, F)),
                  _full_spec((M, F)), _full_spec((M, F)), _full_spec((M, F))],
        out_specs=_full_spec((M, F)),
        compiler_params=_ARB,
    )(x, w, b, m, s, c)


def head(x, w3, b3, m3, s3, c3, w4, b4):
    """Fused (linear1 + LinearMaskedSigmoid + linear2); output is (M, 128)."""
    M, K = x.shape
    F = w3.shape[1]
    return pl.pallas_call(
        _head_kernel,
        out_shape=jax.ShapeDtypeStruct((M, F), jnp.float32),
        grid=(1,),
        in_specs=[_full_spec((M, K)), _full_spec((K, F)), _full_spec((1, F)),
                  _full_spec((1, F)), _full_spec((1, F)), _full_spec((1, F)),
                  _full_spec((F, F)), _full_spec((1, F))],
        out_specs=_full_spec((M, F)),
        compiler_params=_ARB,
    )(x, w3, b3, m3, s3, c3, w4, b4)


# ---------------------------------------------------------------------------
# One-time parameter preparation (reshape / transpose / pad / tile)
# ---------------------------------------------------------------------------

def _pad2d(a, rows, cols, value=0.0):
    return jnp.pad(a, ((0, rows - a.shape[0]), (0, cols - a.shape[1])),
                   constant_values=value)


def _chw_to_rows(p_chw):
    """(C, H, W) -> (H*W, C): rows ordered (h, w), cols = channel."""
    C = p_chw.shape[0]
    return jnp.transpose(p_chw, (1, 2, 0)).reshape(-1, C)


def _prep_act_params(mask, slope, bias, batch):
    """Per-element activation params -> (round_up(batch*H*W, 8), 128) slabs
    matching the channel-last (row = n*H*W + h*W + w, col = c) activation."""
    m = _chw_to_rows(mask)
    s = _chw_to_rows(slope)
    c = _chw_to_rows(bias)
    rows = _round_up(batch * m.shape[0], SUBLANE)

    def expand(a, pad_value):
        a = jnp.pad(a, ((0, 0), (0, LANE - a.shape[1])),
                    constant_values=pad_value)
        a = jnp.tile(a, (batch, 1))
        return jnp.pad(a, ((0, rows - a.shape[0]), (0, 0)),
                       constant_values=pad_value)

    # pad region: mask=1, slope=0, bias=0 -> padded lanes/rows stay exactly 0
    return expand(m, 1.0), expand(s, 0.0), expand(c, 0.0)


def prepare_params(p, batch):
    prep = {}
    # stage 1: Conv2d(3, 16, 4, stride=2) + LinearMaskedSigmoid((16, 15, 15))
    w1 = jnp.transpose(p["conv1_w"].reshape(16, 48))             # (48, 16), (Cin,kh,kw)
    prep["w1"] = _pad2d(w1, 48, LANE)
    prep["b1"] = _pad2d(p["conv1_b"].reshape(1, 16), 1, LANE)
    prep["m1"], prep["s1"], prep["c1"] = _prep_act_params(
        p["ms1_mask"], p["ms1_slope"], p["ms1_bias"], batch)
    # stage 2: Conv2d(16, 32, 4, stride=2) + LinearMaskedSigmoid((32, 6, 6))
    w2 = jnp.transpose(p["conv2_w"].reshape(32, 256))            # (256, 32)
    prep["w2"] = _pad2d(w2, 256, LANE)
    prep["b2"] = _pad2d(p["conv2_b"].reshape(1, 32), 1, LANE)
    prep["m2"], prep["s2"], prep["c2"] = _prep_act_params(
        p["ms2_mask"], p["ms2_slope"], p["ms2_bias"], batch)
    # stage 3: Linear(1152, 100) + LinearMaskedSigmoid(100) + Linear(100, 10)
    # Our flatten order is (H, W, C); permute linear1 columns from PyTorch's
    # (C, H, W) flatten order to match.
    w3 = p["lin1_w"].reshape(100, 32, 6, 6).transpose(0, 2, 3, 1).reshape(100, 1152)
    prep["w3"] = _pad2d(jnp.transpose(w3), 1152, LANE)           # (1152, 128)
    prep["b3"] = _pad2d(p["lin1_b"].reshape(1, 100), 1, LANE)
    prep["m3"] = _pad2d(p["ms3_mask"].reshape(1, 100), 1, LANE, value=1.0)
    prep["s3"] = _pad2d(p["ms3_slope"].reshape(1, 100), 1, LANE)
    prep["c3"] = _pad2d(p["ms3_bias"].reshape(1, 100), 1, LANE)
    prep["w4"] = _pad2d(jnp.transpose(p["lin2_w"]), LANE, LANE)  # (100,10)->(128,128)
    prep["b4"] = _pad2d(p["lin2_b"].reshape(1, 10), 1, LANE)
    return {k: v.astype(jnp.float32) for k, v in prep.items()}


# ---------------------------------------------------------------------------
# Forward pass (3 pallas_calls + minimal XLA glue for patch extraction)
# ---------------------------------------------------------------------------

def forward(prep, x):
    n = x.shape[0]
    # ---- stage 1: conv1 + LinearMaskedSigmoid1 ----
    x_nhwc = jnp.transpose(x, (0, 2, 3, 1))                       # NCHW -> NHWC once
    p1 = lax.conv_general_dilated_patches(
        x_nhwc, (4, 4), (2, 2), "VALID",
        dimension_numbers=("NHWC", "HWIO", "NHWC"))               # (n,15,15,48), (C,kh,kw)
    p1 = p1.reshape(n * 225, 48)
    p1 = jnp.pad(p1, ((0, prep["m1"].shape[0] - p1.shape[0]), (0, 0)))
    a1 = conv_ms(p1, prep["w1"], prep["b1"],
                 prep["m1"], prep["s1"], prep["c1"])              # (rows1, 128)

    # ---- stage 2: conv2 + LinearMaskedSigmoid2 ----
    a1 = a1[: n * 225, :16].reshape(n, 15, 15, 16)                # channel-last, no transpose
    p2 = lax.conv_general_dilated_patches(
        a1, (4, 4), (2, 2), "VALID",
        dimension_numbers=("NHWC", "HWIO", "NHWC"))               # (n,6,6,256)
    p2 = p2.reshape(n * 36, 256)
    p2 = jnp.pad(p2, ((0, prep["m2"].shape[0] - p2.shape[0]), (0, 0)))
    a2 = conv_ms(p2, prep["w2"], prep["b2"],
                 prep["m2"], prep["s2"], prep["c2"])              # (rows2, 128)

    # ---- stage 3: flatten + linear1 + LinearMaskedSigmoid3 + linear2 ----
    x3 = a2[: n * 36, :32].reshape(n, 36 * 32)                    # (H,W,C) flatten order
    rows3 = _round_up(n, SUBLANE)
    x3 = jnp.pad(x3, ((0, rows3 - n), (0, 0)))
    out = head(x3, prep["w3"], prep["b3"], prep["m3"], prep["s3"],
               prep["c3"], prep["w4"], prep["b4"])                # (rows3, 128)
    return out[:n, :10]


# ---------------------------------------------------------------------------
# Deterministic parameter init (mirrors the PyTorch module's shapes)
# ---------------------------------------------------------------------------

def init_params(key):
    ks = jax.random.split(key, 16)
    p = {}
    # conv1: Conv2d(3, 16, 4, stride=2)
    p["conv1_w"] = jax.random.normal(ks[0], (16, 3, 4, 4), jnp.float32) * 0.1
    p["conv1_b"] = jax.random.normal(ks[1], (16,), jnp.float32) * 0.1
    # LinearMaskedSigmoid(size=(16, 15, 15))
    p["ms1_mask"] = (jax.random.uniform(ks[2], (16, 15, 15)) > 0.5).astype(jnp.float32)
    p["ms1_slope"] = jax.random.uniform(ks[3], (16, 15, 15), jnp.float32)
    p["ms1_bias"] = jax.random.uniform(ks[4], (16, 15, 15), jnp.float32)
    # conv2: Conv2d(16, 32, 4, stride=2)
    p["conv2_w"] = jax.random.normal(ks[5], (32, 16, 4, 4), jnp.float32) * 0.1
    p["conv2_b"] = jax.random.normal(ks[6], (32,), jnp.float32) * 0.1
    # LinearMaskedSigmoid(size=(32, 6, 6))
    p["ms2_mask"] = (jax.random.uniform(ks[7], (32, 6, 6)) > 0.5).astype(jnp.float32)
    p["ms2_slope"] = jax.random.uniform(ks[8], (32, 6, 6), jnp.float32)
    p["ms2_bias"] = jax.random.uniform(ks[9], (32, 6, 6), jnp.float32)
    # linear1: Linear(32*6*6, 100)
    p["lin1_w"] = jax.random.normal(ks[10], (100, 32 * 6 * 6), jnp.float32) * 0.05
    p["lin1_b"] = jax.random.normal(ks[11], (100,), jnp.float32) * 0.05
    # LinearMaskedSigmoid(100)
    p["ms3_mask"] = (jax.random.uniform(ks[12], (100,)) > 0.5).astype(jnp.float32)
    p["ms3_slope"] = jax.random.uniform(ks[13], (100,), jnp.float32)
    p["ms3_bias"] = jax.random.uniform(ks[14], (100,), jnp.float32)
    # linear2: Linear(100, 10)
    p["lin2_w"] = jax.random.normal(ks[15], (10, 100), jnp.float32) * 0.05
    p["lin2_b"] = jnp.zeros((10,), jnp.float32)
    return p


if __name__ == "__main__":
    key = jax.random.PRNGKey(0)
    pkey, xkey = jax.random.split(key)
    params = init_params(pkey)
    batch = 2
    x = jax.random.normal(xkey, (batch, 3, 32, 32), jnp.float32)  # NCHW input

    prep = prepare_params(params, batch)   # one-time reshape/pad of all weights
    fwd = jax.jit(forward)

    out = jax.block_until_ready(fwd(prep, x))
    assert out.shape == (batch, 10), out.shape
    assert bool(jnp.all(jnp.isfinite(out)))
    print("KERNEL_OK")
</pallas_src>

<mosaic_0001>
module attributes {stable_mosaic.version = 11 : i64} {
  func.func @_conv_ms_kernel(%arg0: i32, %arg1: memref<456x48xf32, #tpu.memory_space<vmem>>, %arg2: memref<48x128xf32, #tpu.memory_space<vmem>>, %arg3: memref<1x128xf32, #tpu.memory_space<vmem>>, %arg4: memref<456x128xf32, #tpu.memory_space<vmem>>, %arg5: memref<456x128xf32, #tpu.memory_space<vmem>>, %arg6: memref<456x128xf32, #tpu.memory_space<vmem>>, %arg7: memref<456x128xf32, #tpu.memory_space<vmem>>) attributes {dimension_semantics = [#tpu.dimension_semantics<arbitrary>], iteration_bounds = array<i64: 1>, scalar_prefetch = 0 : i64, scratch_operands = 0 : i64, tpu.core_type = #tpu.core_type<tc>, window_params = [{pipeline_mode = #tpu.pipeline_mode<synchronous>, transform_indices = @transform_0, window_bounds = array<i64: 456, 48>}, {pipeline_mode = #tpu.pipeline_mode<synchronous>, transform_indices = @transform_1, window_bounds = array<i64: 48, 128>}, {pipeline_mode = #tpu.pipeline_mode<synchronous>, transform_indices = @transform_2, window_bounds = array<i64: 1, 128>}, {pipeline_mode = #tpu.pipeline_mode<synchronous>, transform_indices = @transform_3, window_bounds = array<i64: 456, 128>}, {pipeline_mode = #tpu.pipeline_mode<synchronous>, transform_indices = @transform_4, window_bounds = array<i64: 456, 128>}, {pipeline_mode = #tpu.pipeline_mode<synchronous>, transform_indices = @transform_5, window_bounds = array<i64: 456, 128>}, {pipeline_mode = #tpu.pipeline_mode<synchronous>, transform_indices = @transform_6, window_bounds = array<i64: 456, 128>}]} {
    %c0 = arith.constant 0 : index
    %c0_0 = arith.constant 0 : index
    %0 = vector.load %arg1[%c0, %c0_0] : memref<456x48xf32, #tpu.memory_space<vmem>>, vector<456x48xf32>
    %c0_1 = arith.constant 0 : index
    %c0_2 = arith.constant 0 : index
    %1 = vector.load %arg2[%c0_1, %c0_2] : memref<48x128xf32, #tpu.memory_space<vmem>>, vector<48x128xf32>
    %cst = arith.constant dense<0.000000e+00> : vector<456x128xf32>
    %2 = tpu.matmul %0, %1, %cst {dimension_numbers = #tpu.dot_dimension_numbers<[1], [0], [0], [1], [0, 0, 1, 1], [], []>} : vector<456x48xf32>, vector<48x128xf32>, vector<456x128xf32> -> vector<456x128xf32>
    %c0_3 = arith.constant 0 : index
    %c0_4 = arith.constant 0 : index
    %3 = vector.load %arg3[%c0_3, %c0_4] : memref<1x128xf32, #tpu.memory_space<vmem>>, vector<1x128xf32>
    %4 = vector.broadcast %3 : vector<1x128xf32> to vector<456x128xf32>
    %5 = arith.addf %2, %4 : vector<456x128xf32>
    %c0_5 = arith.constant 0 : index
    %c0_6 = arith.constant 0 : index
    %6 = vector.load %arg4[%c0_5, %c0_6] : memref<456x128xf32, #tpu.memory_space<vmem>>, vector<456x128xf32>
    %c0_7 = arith.constant 0 : index
    %c0_8 = arith.constant 0 : index
    %7 = vector.load %arg5[%c0_7, %c0_8] : memref<456x128xf32, #tpu.memory_space<vmem>>, vector<456x128xf32>
    %c0_9 = arith.constant 0 : index
    %c0_10 = arith.constant 0 : index
    %8 = vector.load %arg6[%c0_9, %c0_10] : memref<456x128xf32, #tpu.memory_space<vmem>>, vector<456x128xf32>
    %cst_11 = arith.constant 0.000000e+00 : f32
    %9 = vector.broadcast %cst_11 : f32 to vector<456x128xf32>
    %10 = arith.subf %9, %5 : vector<456x128xf32>
    %11 = math.exp %10 : vector<456x128xf32>
    %cst_12 = arith.constant 1.000000e+00 : f32
    %12 = vector.broadcast %cst_12 : f32 to vector<456x128xf32>
    %13 = arith.addf %12, %11 : vector<456x128xf32>
    %14 = tpu.reciprocal %13 {approx = true} : vector<456x128xf32> -> vector<456x128xf32>
    %cst_13 = arith.constant 0.000000e+00 : f32
    %15 = vector.broadcast %cst_13 : f32 to vector<456x128xf32>
    %16 = arith.cmpf one, %6, %15 : vector<456x128xf32>
    %17 = arith.mulf %5, %7 : vector<456x128xf32>
    %18 = arith.addf %17, %8 : vector<456x128xf32>
    %19 = arith.select %16, %18, %14 : vector<456x128xi1>, vector<456x128xf32>
    %c0_14 = arith.constant 0 : index
    %c0_15 = arith.constant 0 : index
    %20 = vector.load %arg7[%c0_14, %c0_15] : memref<456x128xf32, #tpu.memory_space<vmem>>, vector<456x128xf32>
    tpu.vector_store %arg7[%c0_14, %c0_15], %19 {strides = array<i32>} : memref<456x128xf32, #tpu.memory_space<vmem>>, vector<456x128xf32>,
    return
  }
  func.func @transform_0(%arg0: i32) -> (i32, i32) {
    %c0_i32 = arith.constant 0 : i32
    %c0_i32_0 = arith.constant 0 : i32
    %c0_i32_1 = arith.constant 0 : i32
    return %c0_i32, %c0_i32_0 : i32, i32
  }
  func.func @transform_1(%arg0: i32) -> (i32, i32) {
    %c0_i32 = arith.constant 0 : i32
    %c0_i32_0 = arith.constant 0 : i32
    %c0_i32_1 = arith.constant 0 : i32
    return %c0_i32, %c0_i32_0 : i32, i32
  }
  func.func @transform_2(%arg0: i32) -> (i32, i32) {
    %c0_i32 = arith.constant 0 : i32
    %c0_i32_0 = arith.constant 0 : i32
    %c0_i32_1 = arith.constant 0 : i32
    return %c0_i32, %c0_i32_0 : i32, i32
  }
  func.func @transform_3(%arg0: i32) -> (i32, i32) {
    %c0_i32 = arith.constant 0 : i32
    %c0_i32_0 = arith.constant 0 : i32
    %c0_i32_1 = arith.constant 0 : i32
    return %c0_i32, %c0_i32_0 : i32, i32
  }
  func.func @transform_4(%arg0: i32) -> (i32, i32) {
    %c0_i32 = arith.constant 0 : i32
    %c0_i32_0 = arith.constant 0 : i32
    %c0_i32_1 = arith.constant 0 : i32
    return %c0_i32, %c0_i32_0 : i32, i32
  }
  func.func @transform_5(%arg0: i32) -> (i32, i32) {
    %c0_i32 = arith.constant 0 : i32
    %c0_i32_0 = arith.constant 0 : i32
    %c0_i32_1 = arith.constant 0 : i32
    return %c0_i32, %c0_i32_0 : i32, i32
  }
  func.func @transform_6(%arg0: i32) -> (i32, i32) {
    %c0_i32 = arith.constant 0 : i32
    %c0_i32_0 = arith.constant 0 : i32
    %c0_i32_1 = arith.constant 0 : i32
    return %c0_i32, %c0_i32_0 : i32, i32
  }
}

module attributes {stable_mosaic.version = 11 : i64} {
  func.func @_conv_ms_kernel(%arg0: i32, %arg1: memref<72x256xf32, #tpu.memory_space<vmem>>, %arg2: memref<256x128xf32, #tpu.memory_space<vmem>>, %arg3: memref<1x128xf32, #tpu.memory_space<vmem>>, %arg4: memref<72x128xf32, #tpu.memory_space<vmem>>, %arg5: memref<72x128xf32, #tpu.memory_space<vmem>>, %arg6: memref<72x128xf32, #tpu.memory_space<vmem>>, %arg7: memref<72x128xf32, #tpu.memory_space<vmem>>) attributes {dimension_semantics = [#tpu.dimension_semantics<arbitrary>], iteration_bounds = array<i64: 1>, scalar_prefetch = 0 : i64, scratch_operands = 0 : i64, tpu.core_type = #tpu.core_type<tc>, window_params = [{pipeline_mode = #tpu.pipeline_mode<synchronous>, transform_indices = @transform_0, window_bounds = array<i64: 72, 256>}, {pipeline_mode = #tpu.pipeline_mode<synchronous>, transform_indices = @transform_1, window_bounds = array<i64: 256, 128>}, {pipeline_mode = #tpu.pipeline_mode<synchronous>, transform_indices = @transform_2, window_bounds = array<i64: 1, 128>}, {pipeline_mode = #tpu.pipeline_mode<synchronous>, transform_indices = @transform_3, window_bounds = array<i64: 72, 128>}, {pipeline_mode = #tpu.pipeline_mode<synchronous>, transform_indices = @transform_4, window_bounds = array<i64: 72, 128>}, {pipeline_mode = #tpu.pipeline_mode<synchronous>, transform_indices = @transform_5, window_bounds = array<i64: 72, 128>}, {pipeline_mode = #tpu.pipeline_mode<synchronous>, transform_indices = @transform_6, window_bounds = array<i64: 72, 128>}]} {
    %c0 = arith.constant 0 : index
    %c0_0 = arith.constant 0 : index
    %0 = vector.load %arg1[%c0, %c0_0] : memref<72x256xf32, #tpu.memory_space<vmem>>, vector<72x256xf32>
    %c0_1 = arith.constant 0 : index
    %c0_2 = arith.constant 0 : index
    %1 = vector.load %arg2[%c0_1, %c0_2] : memref<256x128xf32, #tpu.memory_space<vmem>>, vector<256x128xf32>
    %cst = arith.constant dense<0.000000e+00> : vector<72x128xf32>
    %2 = tpu.matmul %0, %1, %cst {dimension_numbers = #tpu.dot_dimension_numbers<[1], [0], [0], [1], [0, 0, 1, 1], [], []>} : vector<72x256xf32>, vector<256x128xf32>, vector<72x128xf32> -> vector<72x128xf32>
    %c0_3 = arith.constant 0 : index
    %c0_4 = arith.constant 0 : index
    %3 = vector.load %arg3[%c0_3, %c0_4] : memref<1x128xf32, #tpu.memory_space<vmem>>, vector<1x128xf32>
    %4 = vector.broadcast %3 : vector<1x128xf32> to vector<72x128xf32>
    %5 = arith.addf %2, %4 : vector<72x128xf32>
    %c0_5 = arith.constant 0 : index
    %c0_6 = arith.constant 0 : index
    %6 = vector.load %arg4[%c0_5, %c0_6] : memref<72x128xf32, #tpu.memory_space<vmem>>, vector<72x128xf32>
    %c0_7 = arith.constant 0 : index
    %c0_8 = arith.constant 0 : index
    %7 = vector.load %arg5[%c0_7, %c0_8] : memref<72x128xf32, #tpu.memory_space<vmem>>, vector<72x128xf32>
    %c0_9 = arith.constant 0 : index
    %c0_10 = arith.constant 0 : index
    %8 = vector.load %arg6[%c0_9, %c0_10] : memref<72x128xf32, #tpu.memory_space<vmem>>, vector<72x128xf32>
    %cst_11 = arith.constant 0.000000e+00 : f32
    %9 = vector.broadcast %cst_11 : f32 to vector<72x128xf32>
    %10 = arith.subf %9, %5 : vector<72x128xf32>
    %11 = math.exp %10 : vector<72x128xf32>
    %cst_12 = arith.constant 1.000000e+00 : f32
    %12 = vector.broadcast %cst_12 : f32 to vector<72x128xf32>
    %13 = arith.addf %12, %11 : vector<72x128xf32>
    %14 = tpu.reciprocal %13 {approx = true} : vector<72x128xf32> -> vector<72x128xf32>
    %cst_13 = arith.constant 0.000000e+00 : f32
    %15 = vector.broadcast %cst_13 : f32 to vector<72x128xf32>
    %16 = arith.cmpf one, %6, %15 : vector<72x128xf32>
    %17 = arith.mulf %5, %7 : vector<72x128xf32>
    %18 = arith.addf %17, %8 : vector<72x128xf32>
    %19 = arith.select %16, %18, %14 : vector<72x128xi1>, vector<72x128xf32>
    %c0_14 = arith.constant 0 : index
    %c0_15 = arith.constant 0 : index
    %20 = vector.load %arg7[%c0_14, %c0_15] : memref<72x128xf32, #tpu.memory_space<vmem>>, vector<72x128xf32>
    tpu.vector_store %arg7[%c0_14, %c0_15], %19 {strides = array<i32>} : memref<72x128xf32, #tpu.memory_space<vmem>>, vector<72x128xf32>,
    return
  }
  func.func @transform_0(%arg0: i32) -> (i32, i32) {
    %c0_i32 = arith.constant 0 : i32
    %c0_i32_0 = arith.constant 0 : i32
    %c0_i32_1 = arith.constant 0 : i32
    return %c0_i32, %c0_i32_0 : i32, i32
  }
  func.func @transform_1(%arg0: i32) -> (i32, i32) {
    %c0_i32 = arith.constant 0 : i32
    %c0_i32_0 = arith.constant 0 : i32
    %c0_i32_1 = arith.constant 0 : i32
    return %c0_i32, %c0_i32_0 : i32, i32
  }
  func.func @transform_2(%arg0: i32) -> (i32, i32) {
    %c0_i32 = arith.constant 0 : i32
    %c0_i32_0 = arith.constant 0 : i32
    %c0_i32_1 = arith.constant 0 : i32
    return %c0_i32, %c0_i32_0 : i32, i32
  }
  func.func @transform_3(%arg0: i32) -> (i32, i32) {
    %c0_i32 = arith.constant 0 : i32
    %c0_i32_0 = arith.constant 0 : i32
    %c0_i32_1 = arith.constant 0 : i32
    return %c0_i32, %c0_i32_0 : i32, i32
  }
  func.func @transform_4(%arg0: i32) -> (i32, i32) {
    %c0_i32 = arith.constant 0 : i32
    %c0_i32_0 = arith.constant 0 : i32
    %c0_i32_1 = arith.constant 0 : i32
    return %c0_i32, %c0_i32_0 : i32, i32
  }
  func.func @transform_5(%arg0: i32) -> (i32, i32) {
    %c0_i32 = arith.constant 0 : i32
    %c0_i32_0 = arith.constant 0 : i32
    %c0_i32_1 = arith.constant 0 : i32
    return %c0_i32, %c0_i32_0 : i32, i32
  }
  func.func @transform_6(%arg0: i32) -> (i32, i32) {
    %c0_i32 = arith.constant 0 : i32
    %c0_i32_0 = arith.constant 0 : i32
    %c0_i32_1 = arith.constant 0 : i32
    return %c0_i32, %c0_i32_0 : i32, i32
  }
}

module attributes {stable_mosaic.version = 11 : i64} {
  func.func @_head_kernel(%arg0: i32, %arg1: memref<8x1152xf32, #tpu.memory_space<vmem>>, %arg2: memref<1152x128xf32, #tpu.memory_space<vmem>>, %arg3: memref<1x128xf32, #tpu.memory_space<vmem>>, %arg4: memref<1x128xf32, #tpu.memory_space<vmem>>, %arg5: memref<1x128xf32, #tpu.memory_space<vmem>>, %arg6: memref<1x128xf32, #tpu.memory_space<vmem>>, %arg7: memref<128x128xf32, #tpu.memory_space<vmem>>, %arg8: memref<1x128xf32, #tpu.memory_space<vmem>>, %arg9: memref<8x128xf32, #tpu.memory_space<vmem>>) attributes {dimension_semantics = [#tpu.dimension_semantics<arbitrary>], iteration_bounds = array<i64: 1>, scalar_prefetch = 0 : i64, scratch_operands = 0 : i64, tpu.core_type = #tpu.core_type<tc>, window_params = [{pipeline_mode = #tpu.pipeline_mode<synchronous>, transform_indices = @transform_0, window_bounds = array<i64: 8, 1152>}, {pipeline_mode = #tpu.pipeline_mode<synchronous>, transform_indices = @transform_1, window_bounds = array<i64: 1152, 128>}, {pipeline_mode = #tpu.pipeline_mode<synchronous>, transform_indices = @transform_2, window_bounds = array<i64: 1, 128>}, {pipeline_mode = #tpu.pipeline_mode<synchronous>, transform_indices = @transform_3, window_bounds = array<i64: 1, 128>}, {pipeline_mode = #tpu.pipeline_mode<synchronous>, transform_indices = @transform_4, window_bounds = array<i64: 1, 128>}, {pipeline_mode = #tpu.pipeline_mode<synchronous>, transform_indices = @transform_5, window_bounds = array<i64: 1, 128>}, {pipeline_mode = #tpu.pipeline_mode<synchronous>, transform_indices = @transform_6, window_bounds = array<i64: 128, 128>}, {pipeline_mode = #tpu.pipeline_mode<synchronous>, transform_indices = @transform_7, window_bounds = array<i64: 1, 128>}, {pipeline_mode = #tpu.pipeline_mode<synchronous>, transform_indices = @transform_8, window_bounds = array<i64: 8, 128>}]} {
    %c0 = arith.constant 0 : index
    %c0_0 = arith.constant 0 : index
    %0 = vector.load %arg1[%c0, %c0_0] : memref<8x1152xf32, #tpu.memory_space<vmem>>, vector<8x1152xf32>
    %c0_1 = arith.constant 0 : index
    %c0_2 = arith.constant 0 : index
    %1 = vector.load %arg2[%c0_1, %c0_2] : memref<1152x128xf32, #tpu.memory_space<vmem>>, vector<1152x128xf32>
    %cst = arith.constant dense<0.000000e+00> : vector<8x128xf32>
    %2 = tpu.matmul %0, %1, %cst {dimension_numbers = #tpu.dot_dimension_numbers<[1], [0], [0], [1], [0, 0, 1, 1], [], []>} : vector<8x1152xf32>, vector<1152x128xf32>, vector<8x128xf32> -> vector<8x128xf32>
    %c0_3 = arith.constant 0 : index
    %c0_4 = arith.constant 0 : index
    %3 = vector.load %arg3[%c0_3, %c0_4] : memref<1x128xf32, #tpu.memory_space<vmem>>, vector<1x128xf32>
    %4 = vector.broadcast %3 : vector<1x128xf32> to vector<8x128xf32>
    %5 = arith.addf %2, %4 : vector<8x128xf32>
    %c0_5 = arith.constant 0 : index
    %c0_6 = arith.constant 0 : index
    %6 = vector.load %arg4[%c0_5, %c0_6] : memref<1x128xf32, #tpu.memory_space<vmem>>, vector<1x128xf32>
    %c0_7 = arith.constant 0 : index
    %c0_8 = arith.constant 0 : index
    %7 = vector.load %arg5[%c0_7, %c0_8] : memref<1x128xf32, #tpu.memory_space<vmem>>, vector<1x128xf32>
    %c0_9 = arith.constant 0 : index
    %c0_10 = arith.constant 0 : index
    %8 = vector.load %arg6[%c0_9, %c0_10] : memref<1x128xf32, #tpu.memory_space<vmem>>, vector<1x128xf32>
    %cst_11 = arith.constant 0.000000e+00 : f32
    %9 = vector.broadcast %cst_11 : f32 to vector<8x128xf32>
    %10 = arith.subf %9, %5 : vector<8x128xf32>
    %11 = math.exp %10 : vector<8x128xf32>
    %cst_12 = arith.constant 1.000000e+00 : f32
    %12 = vector.broadcast %cst_12 : f32 to vector<8x128xf32>
    %13 = arith.addf %12, %11 : vector<8x128xf32>
    %14 = tpu.reciprocal %13 {approx = true} : vector<8x128xf32> -> vector<8x128xf32>
    %cst_13 = arith.constant 0.000000e+00 : f32
    %15 = vector.broadcast %cst_13 : f32 to vector<1x128xf32>
    %16 = arith.cmpf one, %6, %15 : vector<1x128xf32>
    %17 = vector.broadcast %7 : vector<1x128xf32> to vector<8x128xf32>
    %18 = arith.mulf %5, %17 : vector<8x128xf32>
    %19 = vector.broadcast %8 : vector<1x128xf32> to vector<8x128xf32>
    %20 = arith.addf %18, %19 : vector<8x128xf32>
    %21 = vector.shape_cast %16 : vector<1x128xi1> to vector<1x128xi1>
    %22 = vector.broadcast %21 : vector<1x128xi1> to vector<8x128xi1>
    %23 = arith.select %22, %20, %14 : vector<8x128xi1>, vector<8x128xf32>
    %c0_14 = arith.constant 0 : index
    %c0_15 = arith.constant 0 : index
    %24 = vector.load %arg7[%c0_14, %c0_15] : memref<128x128xf32, #tpu.memory_space<vmem>>, vector<128x128xf32>
    %cst_16 = arith.constant dense<0.000000e+00> : vector<8x128xf32>
    %25 = tpu.matmul %23, %24, %cst_16 {dimension_numbers = #tpu.dot_dimension_numbers<[1], [0], [0], [1], [0, 0, 1, 1], [], []>} : vector<8x128xf32>, vector<128x128xf32>, vector<8x128xf32> -> vector<8x128xf32>
    %c0_17 = arith.constant 0 : index
    %c0_18 = arith.constant 0 : index
    %26 = vector.load %arg8[%c0_17, %c0_18] : memref<1x128xf32, #tpu.memory_space<vmem>>, vector<1x128xf32>
    %27 = vector.broadcast %26 : vector<1x128xf32> to vector<8x128xf32>
    %28 = arith.addf %25, %27 : vector<8x128xf32>
    %c0_19 = arith.constant 0 : index
    %c0_20 = arith.constant 0 : index
    %29 = vector.load %arg9[%c0_19, %c0_20] : memref<8x128xf32, #tpu.memory_space<vmem>>, vector<8x128xf32>
    tpu.vector_store %arg9[%c0_19, %c0_20], %28 {strides = array<i32>} : memref<8x128xf32, #tpu.memory_space<vmem>>, vector<8x128xf32>,
    return
  }
  func.func @transform_0(%arg0: i32) -> (i32, i32) {
    %c0_i32 = arith.constant 0 : i32
    %c0_i32_0 = arith.constant 0 : i32
    %c0_i32_1 = arith.constant 0 : i32
    return %c0_i32, %c0_i32_0 : i32, i32
  }
  func.func @transform_1(%arg0: i32) -> (i32, i32) {
    %c0_i32 = arith.constant 0 : i32
    %c0_i32_0 = arith.constant 0 : i32
    %c0_i32_1 = arith.constant 0 : i32
    return %c0_i32, %c0_i32_0 : i32, i32
  }
  func.func @transform_2(%arg0: i32) -> (i32, i32) {
    %c0_i32 = arith.constant 0 : i32
    %c0_i32_0 = arith.constant 0 : i32
    %c0_i32_1 = arith.constant 0 : i32
    return %c0_i32, %c0_i32_0 : i32, i32
  }
  func.func @transform_3(%arg0: i32) -> (i32, i32) {
    %c0_i32 = arith.constant 0 : i32
    %c0_i32_0 = arith.constant 0 : i32
    %c0_i32_1 = arith.constant 0 : i32
    return %c0_i32, %c0_i32_0 : i32, i32
  }
  func.func @transform_4(%arg0: i32) -> (i32, i32) {
    %c0_i32 = arith.constant 0 : i32
    %c0_i32_0 = arith.constant 0 : i32
    %c0_i32_1 = arith.constant 0 : i32
    return %c0_i32, %c0_i32_0 : i32, i32
  }
  func.func @transform_5(%arg0: i32) -> (i32, i32) {
    %c0_i32 = arith.constant 0 : i32
    %c0_i32_0 = arith.constant 0 : i32
    %c0_i32_1 = arith.constant 0 : i32
    return %c0_i32, %c0_i32_0 : i32, i32
  }
  func.func @transform_6(%arg0: i32) -> (i32, i32) {
    %c0_i32 = arith.constant 0 : i32
    %c0_i32_0 = arith.constant 0 : i32
    %c0_i32_1 = arith.constant 0 : i32
    return %c0_i32, %c0_i32_0 : i32, i32
  }
  func.func @transform_7(%arg0: i32) -> (i32, i32) {
    %c0_i32 = arith.constant 0 : i32
    %c0_i32_0 = arith.constant 0 : i32
    %c0_i32_1 = arith.constant 0 : i32
    return %c0_i32, %c0_i32_0 : i32, i32
  }
  func.func @transform_8(%arg0: i32) -> (i32, i32) {
    %c0_i32 = arith.constant 0 : i32
    %c0_i32_0 = arith.constant 0 : i32
    %c0_i32_1 = arith.constant 0 : i32
    return %c0_i32, %c0_i32_0 : i32, i32
  }
}

</mosaic_0001>

<llo_original>
// kernel: forward.3
$region0: #{forward.3}
  #allocation0 [shape = 'u32[]', space=smem, size = 0x4, offset = 0x4, fixed_abs, tag = 'smem constant byte address 0x4 - core index']
  #allocation1 [shape = 'u32[144,128]{1,0:T(1,128)}', space=vmem, size = 0x12000, scoped, tag = 'internal scratch']
  %s0 = inlined_call_operand.vmem [shape: f32[456,48], index: 0, kind: input, shape index: {}]
  %s1 = inlined_call_operand.vmem [shape: f32[48,128], index: 1, kind: input, shape index: {}]
  %s2 = inlined_call_operand.vmem [shape: f32[1,128], index: 2, kind: input, shape index: {}]
  %s3 = inlined_call_operand.vmem [shape: f32[456,128], index: 3, kind: input, shape index: {}]
  %s4 = inlined_call_operand.vmem [shape: f32[456,128], index: 4, kind: input, shape index: {}]
  %s5 = inlined_call_operand.vmem [shape: f32[456,128], index: 5, kind: input, shape index: {}]
  %s6 = inlined_call_operand.vmem [shape: f32[456,128], index: 6, kind: output, shape index: {}]
  %s7 = sld [smem:[#allocation0]]
  $region34: #{forward.3} parent=0
    _
  %s9 = ssub.s32 1, %s7
  %s10 = scalar_select 0, %s9, %s7
  // Predicated region
  $region2: #{forward.3} parent=0 // pred_check
    _
  $region3: #{forward.3} parent=0 // pred_check_branch
    %12 = sbr.rel (0) target = $region5
  $region4: #{forward.3} parent=0 // pred_region
    _
  $region5: #{forward.3} parent=0 // pred_fallthru
    _
  // Predicated region
  $region6: #{forward.3} parent=0 // pred_check
    _
  $region7: #{forward.3} parent=0 // pred_check_branch
    %14 = sbr.rel (0) target = $region9
  $region8: #{forward.3} parent=0 // pred_region
    _
  $region9: #{forward.3} parent=0 // pred_fallthru
    _
  // Predicated region
  $region10: #{forward.3} parent=0 // pred_check
    _
  $region11: #{forward.3} parent=0 // pred_check_branch
    %16 = sbr.rel (0) target = $region13
  $region12: #{forward.3} parent=0 // pred_region
    _
  $region13: #{forward.3} parent=0 // pred_fallthru
    _
  // Predicated region
  $region14: #{forward.3} parent=0 // pred_check
    _
  $region15: #{forward.3} parent=0 // pred_check_branch
    %18 = sbr.rel (0) target = $region17
  $region16: #{forward.3} parent=0 // pred_region
    _
  $region17: #{forward.3} parent=0 // pred_fallthru
    _
  // Predicated region
  $region18: #{forward.3} parent=0 // pred_check
    _
  $region19: #{forward.3} parent=0 // pred_check_branch
    %20 = sbr.rel (0) target = $region21
  $region20: #{forward.3} parent=0 // pred_region
    _
  $region21: #{forward.3} parent=0 // pred_fallthru
    _
  // Predicated region
  $region22: #{forward.3} parent=0 // pred_check
    _
  $region23: #{forward.3} parent=0 // pred_check_branch
    %22 = sbr.rel (0) target = $region25
  $region24: #{forward.3} parent=0 // pred_region
    _
  $region25: #{forward.3} parent=0 // pred_fallthru
    _
  %v23 = vld [vmem:[%s0] sm:$0xff]
  %v24 = vld [vmem:[%s0 + $0x8] sm:$0xff]
  %v25 = vld [vmem:[%s0 + $0x10] sm:$0xff]
  %v26 = vld [vmem:[%s0 + $0x18] sm:$0xff]
  %v27 = vld [vmem:[%s0 + $0x20] sm:$0xff]
  %v28 = vld [vmem:[%s0 + $0x28] sm:$0xff]
  %v29 = vld [vmem:[%s0 + $0x30] sm:$0xff]
  %v30 = vld [vmem:[%s0 + $0x38] sm:$0xff]
  %v31 = vld [vmem:[%s0 + $0x40] sm:$0xff]
  %v32 = vld [vmem:[%s0 + $0x48] sm:$0xff]
  %v33 = vld [vmem:[%s0 + $0x50] sm:$0xff]
  %v34 = vld [vmem:[%s0 + $0x58] sm:$0xff]
  %v35 = vld [vmem:[%s0 + $0x60] sm:$0xff]
  %v36 = vld [vmem:[%s0 + $0x68] sm:$0xff]
  %v37 = vld [vmem:[%s0 + $0x70] sm:$0xff]
  %v38 = vld [vmem:[%s0 + $0x78] sm:$0xff]
  %v39 = vld [vmem:[%s0 + $0x80] sm:$0xff]
  %v40 = vld [vmem:[%s0 + $0x88] sm:$0xff]
  %v41 = vld [vmem:[%s0 + $0x90] sm:$0xff]
  %v42 = vld [vmem:[%s0 + $0x98] sm:$0xff]
  %v43 = vld [vmem:[%s0 + $0xa0] sm:$0xff]
  %v44 = vld [vmem:[%s0 + $0xa8] sm:$0xff]
  %v45 = vld [vmem:[%s0 + $0xb0] sm:$0xff]
  %v46 = vld [vmem:[%s0 + $0xb8] sm:$0xff]
  %v47 = vld [vmem:[%s0 + $0xc0] sm:$0xff]
  %v48 = vld [vmem:[%s0 + $0xc8] sm:$0xff]
  %v49 = vld [vmem:[%s0 + $0xd0] sm:$0xff]
  %v50 = vld [vmem:[%s0 + $0xd8] sm:$0xff]
  %v51 = vld [vmem:[%s0 + $0xe0] sm:$0xff]
  %v52 = vld [vmem:[%s0 + $0xe8] sm:$0xff]
  %v53 = vld [vmem:[%s0 + $0xf0] sm:$0xff]
  %v54 = vld [vmem:[%s0 + $0xf8] sm:$0xff]
  %v55 = vld [vmem:[%s0 + $0x100] sm:$0xff]
  %v56 = vld [vmem:[%s0 + $0x108] sm:$0xff]
  %v57 = vld [vmem:[%s0 + $0x110] sm:$0xff]
  %v58 = vld [vmem:[%s0 + $0x118] sm:$0xff]
  %v59 = vld [vmem:[%s0 + $0x120] sm:$0xff]
  %v60 = vld [vmem:[%s0 + $0x128] sm:$0xff]
  %v61 = vld [vmem:[%s0 + $0x130] sm:$0xff]
  %v62 = vld [vmem:[%s0 + $0x138] sm:$0xff]
  %v63 = vld [vmem:[%s0 + $0x140] sm:$0xff]
  %v64 = vld [vmem:[%s0 + $0x148] sm:$0xff]
  %v65 = vld [vmem:[%s0 + $0x150] sm:$0xff]
  %v66 = vld [vmem:[%s0 + $0x158] sm:$0xff]
  %v67 = vld [vmem:[%s0 + $0x160] sm:$0xff]
  %v68 = vld [vmem:[%s0 + $0x168] sm:$0xff]
  %v69 = vld [vmem:[%s0 + $0x170] sm:$0xff]
  %v70 = vld [vmem:[%s0 + $0x178] sm:$0xff]
  %v71 = vld [vmem:[%s0 + $0x180] sm:$0xff]
  %v72 = vld [vmem:[%s0 + $0x188] sm:$0xff]
  %v73 = vld [vmem:[%s0 + $0x190] sm:$0xff]
  %v74 = vld [vmem:[%s0 + $0x198] sm:$0xff]
  %v75 = vld [vmem:[%s0 + $0x1a0] sm:$0xff]
  %v76 = vld [vmem:[%s0 + $0x1a8] sm:$0xff]
  %v77 = vld [vmem:[%s0 + $0x1b0] sm:$0xff]
  %v78 = vld [vmem:[%s0 + $0x1b8] sm:$0xff]
  %v79 = vld [vmem:[%s0 + $0x1c0] sm:$0xff]
  %v80 = vld [vmem:[%s1] sm:$0xff]
  %v81 = vld [vmem:[%s1 + $0x8] sm:$0xff]
  %v82 = vld [vmem:[%s1 + $0x10] sm:$0xff]
  %v83 = vld [vmem:[%s1 + $0x18] sm:$0xff]
  %v84 = vld [vmem:[%s1 + $0x20] sm:$0xff]
  %v85 = vld [vmem:[%s1 + $0x28] sm:$0xff]
  %v86 = vld [vmem:[%s2] sm:$0x1]
  %v88 = vlaneseq
  %v89 = vshrl.u32 %v88, 7
  %v90 = vsub.s32 0, %v89
  %v91 = vrot.slane %v86, %v90
  %vm93 = vcmask 392192
  %v95 = vsel %vm93, %v23, 0
  %v98 = vsel %vm93, %v24, 0
  %v101 = vsel %vm93, %v25, 0
  %v104 = vsel %vm93, %v26, 0
  %v107 = vsel %vm93, %v27, 0
  %v110 = vsel %vm93, %v28, 0
  %v113 = vsel %vm93, %v29, 0
  %v116 = vsel %vm93, %v30, 0
  %v119 = vsel %vm93, %v31, 0
  %v122 = vsel %vm93, %v32, 0
  %v125 = vsel %vm93, %v33, 0
  %v128 = vsel %vm93, %v34, 0
  %v131 = vsel %vm93, %v35, 0
  %v134 = vsel %vm93, %v36, 0
  %v137 = vsel %vm93, %v37, 0
  %v140 = vsel %vm93, %v38, 0
  %v143 = vsel %vm93, %v39, 0
  %v146 = vsel %vm93, %v40, 0
  %v149 = vsel %vm93, %v41, 0
  %v152 = vsel %vm93, %v42, 0
  %v155 = vsel %vm93, %v43, 0
  %v158 = vsel %vm93, %v44, 0
  %v161 = vsel %vm93, %v45, 0
  %v164 = vsel %vm93, %v46, 0
  %v167 = vsel %vm93, %v47, 0
  %v170 = vsel %vm93, %v48, 0
  %v173 = vsel %vm93, %v49, 0
  %v176 = vsel %vm93, %v50, 0
  %v179 = vsel %vm93, %v51, 0
  %v182 = vsel %vm93, %v52, 0
  %v185 = vsel %vm93, %v53, 0
  %v188 = vsel %vm93, %v54, 0
  %v191 = vsel %vm93, %v55, 0
  %v194 = vsel %vm93, %v56, 0
  %v197 = vsel %vm93, %v57, 0
  %v200 = vsel %vm93, %v58, 0
  %v203 = vsel %vm93, %v59, 0
  %v206 = vsel %vm93, %v60, 0
  %v209 = vsel %vm93, %v61, 0
  %v212 = vsel %vm93, %v62, 0
  %v215 = vsel %vm93, %v63, 0
  %v218 = vsel %vm93, %v64, 0
  %v221 = vsel %vm93, %v65, 0
  %v224 = vsel %vm93, %v66, 0
  %v227 = vsel %vm93, %v67, 0
  %v230 = vsel %vm93, %v68, 0
  %v233 = vsel %vm93, %v69, 0
  %v236 = vsel %vm93, %v70, 0
  %v239 = vsel %vm93, %v71, 0
  %v242 = vsel %vm93, %v72, 0
  %v245 = vsel %vm93, %v73, 0
  %v248 = vsel %vm93, %v74, 0
  %v251 = vsel %vm93, %v75, 0
  %v254 = vsel %vm93, %v76, 0
  %v257 = vsel %vm93, %v77, 0
  %v260 = vsel %vm93, %v78, 0
  %v263 = vsel %vm93, %v79, 0
  %265 = vmatprep.subr.mxu0 0.0
  %266 = vmatpush1.msra.mxu0 0.0
  %267 = vmatprep.subr.mxu0 0.0
  %268 = vmatpush1.msra.mxu0 0.0
  %269 = vmatprep.subr.mxu0 0.0
  %270 = vmatpush1.msra.mxu0 0.0
  %271 = vmatprep.subr.mxu0 0.0
  %272 = vmatpush1.msra.mxu0 0.0
  %273 = vmatprep.subr.mxu0 0.0
  %274 = vmatpush1.msra.mxu0 0.0
  %275 = vmatprep.subr.mxu0 0.0
  %276 = vmatpush1.msra.mxu0 0.0
  %277 = vmatprep.subr.mxu0 0.0
  %278 = vmatpush1.msra.mxu0 0.0
  %279 = vmatprep.subr.mxu0 0.0
  %280 = vmatpush1.msra.mxu0 0.0
  %281 = vmatprep.subr.mxu0 0.0
  %282 = vmatpush1.msra.mxu0 0.0
  %283 = vmatprep.subr.mxu0 0.0
  %284 = vmatpush1.msra.mxu0 0.0
  %285 = vmatprep.subr.mxu0 0.0
  %286 = vmatpush1.msra.mxu0 %v85
  %287 = vmatprep.subr.mxu0 0.0
  %288 = vmatpush1.msra.mxu0 %v84
  %289 = vmatprep.subr.mxu0 0.0
  %290 = vmatpush1.msra.mxu0 %v83
  %291 = vmatprep.subr.mxu0 0.0
  %292 = vmatpush1.msra.mxu0 %v82
  %293 = vmatprep.subr.mxu0 0.0
  %294 = vmatpush1.msra.mxu0 %v81
  %295 = vmatprep.subr.mxu0 0.0
  %296 = vmatpush1.msra.mxu0 %v80
  %297 = vmatprep.subr.mxu0 0.0
  %298 = vmatpush2.msra.mxu0 0.0
  %299 = vmatprep.subr.mxu0 0.0
  %300 = vmatpush2.msra.mxu0 0.0
  %301 = vmatprep.subr.mxu0 0.0
  %302 = vmatpush2.msra.mxu0 0.0
  %303 = vmatprep.subr.mxu0 0.0
  %304 = vmatpush2.msra.mxu0 0.0
  %305 = vmatprep.subr.mxu0 0.0
  %306 = vmatpush2.msra.mxu0 0.0
  %307 = vmatprep.subr.mxu0 0.0
  %308 = vmatpush2.msra.mxu0 0.0
  %309 = vmatprep.subr.mxu0 0.0
  %310 = vmatpush2.msra.mxu0 0.0
  %311 = vmatprep.subr.mxu0 0.0
  %312 = vmatpush2.msra.mxu0 0.0
  %313 = vmatprep.subr.mxu0 0.0
  %314 = vmatpush2.msra.mxu0 0.0
  %315 = vmatprep.subr.mxu0 0.0
  %316 = vmatpush2.msra.mxu0 0.0
  %317 = vmatprep.subr.mxu0 0.0
  %318 = vmatpush2.msra.mxu0 0.0
  %319 = vmatprep.subr.mxu0 0.0
  %320 = vmatpush2.msra.mxu0 0.0
  %321 = vmatprep.subr.mxu0 0.0
  %322 = vmatpush2.msra.mxu0 0.0
  %323 = vmatprep.subr.mxu0 0.0
  %324 = vmatpush2.msra.mxu0 0.0
  %325 = vmatprep.subr.mxu0 0.0
  %326 = vmatpush2.msra.mxu0 0.0
  %327 = vmatprep.subr.mxu0 0.0
  %328 = vmatpush2.msra.mxu0 0.0
  %329 = vmatprep.mubr.f32.mxu0 0.0
  %330 = vmatmul.mubr.f32.gmra.mxu0 %v95
  %v331 = vpop.f32.mrf.mxu0
  %v332 = vadd.f32 %v91, %v331
  %v333 = vpop.f32.mrf.mxu0
  %334 = vmatprep.mubr.f32.mxu0 0.0
  %335 = vmatmul.mubr.f32.gmra.mxu0 %v98
  %v336 = vpop.f32.mrf.mxu0
  %v337 = vadd.f32 %v91, %v336
  %v338 = vpop.f32.mrf.mxu0
  %339 = vmatprep.mubr.f32.mxu0 0.0
  %340 = vmatmul.mubr.f32.gmra.mxu0 %v101
  %v341 = vpop.f32.mrf.mxu0
  %v342 = vadd.f32 %v91, %v341
  %v343 = vpop.f32.mrf.mxu0
  %344 = vmatprep.mubr.f32.mxu0 0.0
  %345 = vmatmul.mubr.f32.gmra.mxu0 %v104
  %v346 = vpop.f32.mrf.mxu0
  %v347 = vadd.f32 %v91, %v346
  %v348 = vpop.f32.mrf.mxu0
  %349 = vmatprep.mubr.f32.mxu0 0.0
  %350 = vmatmul.mubr.f32.gmra.mxu0 %v107
  %v351 = vpop.f32.mrf.mxu0
  %v352 = vadd.f32 %v91, %v351
  %v353 = vpop.f32.mrf.mxu0
  %354 = vmatprep.mubr.f32.mxu0 0.0
  %355 = vmatmul.mubr.f32.gmra.mxu0 %v110
  %v356 = vpop.f32.mrf.mxu0
  %v357 = vadd.f32 %v91, %v356
  %v358 = vpop.f32.mrf.mxu0
  %359 = vmatprep.mubr.f32.mxu0 0.0
  %360 = vmatmul.mubr.f32.gmra.mxu0 %v113
  %v361 = vpop.f32.mrf.mxu0
  %v362 = vadd.f32 %v91, %v361
  %v363 = vpop.f32.mrf.mxu0
  %364 = vmatprep.mubr.f32.mxu0 0.0
  %365 = vmatmul.mubr.f32.gmra.mxu0 %v116
  %v366 = vpop.f32.mrf.mxu0
  %v367 = vadd.f32 %v91, %v366
  %v368 = vpop.f32.mrf.mxu0
  %369 = vmatprep.mubr.f32.mxu0 0.0
  %370 = vmatmul.mubr.f32.gmra.mxu0 %v119
  %v371 = vpop.f32.mrf.mxu0
  %v372 = vadd.f32 %v91, %v371
  %v373 = vpop.f32.mrf.mxu0
  %374 = vmatprep.mubr.f32.mxu0 0.0
  %375 = vmatmul.mubr.f32.gmra.mxu0 %v122
  %v376 = vpop.f32.mrf.mxu0
  %v377 = vadd.f32 %v91, %v376
  %v378 = vpop.f32.mrf.mxu0
  %379 = vmatprep.mubr.f32.mxu0 0.0
  %380 = vmatmul.mubr.f32.gmra.mxu0 %v125
  %v381 = vpop.f32.mrf.mxu0
  %v382 = vadd.f32 %v91, %v381
  %v383 = vpop.f32.mrf.mxu0
  %384 = vmatprep.mubr.f32.mxu0 0.0
  %385 = vmatmul.mubr.f32.gmra.mxu0 %v128
  %v386 = vpop.f32.mrf.mxu0
  %v387 = vadd.f32 %v91, %v386
  %v388 = vpop.f32.mrf.mxu0
  %389 = vmatprep.mubr.f32.mxu0 0.0
  %390 = vmatmul.mubr.f32.gmra.mxu0 %v131
  %v391 = vpop.f32.mrf.mxu0
  %v392 = vadd.f32 %v91, %v391
  %v393 = vpop.f32.mrf.mxu0
  %394 = vmatprep.mubr.f32.mxu0 0.0
  %395 = vmatmul.mubr.f32.gmra.mxu0 %v134
  %v396 = vpop.f32.mrf.mxu0
  %v397 = vadd.f32 %v91, %v396
  %v398 = vpop.f32.mrf.mxu0
  %399 = vmatprep.mubr.f32.mxu0 0.0
  %400 = vmatmul.mubr.f32.gmra.mxu0 %v137
  %v401 = vpop.f32.mrf.mxu0
  %v402 = vadd.f32 %v91, %v401
  %v403 = vpop.f32.mrf.mxu0
  %404 = vmatprep.mubr.f32.mxu0 0.0
  %405 = vmatmul.mubr.f32.gmra.mxu0 %v140
  %v406 = vpop.f32.mrf.mxu0
  %v407 = vadd.f32 %v91, %v406
  %v408 = vpop.f32.mrf.mxu0
  %409 = vmatprep.mubr.f32.mxu0 0.0
  %410 = vmatmul.mubr.f32.gmra.mxu0 %v143
  %v411 = vpop.f32.mrf.mxu0
  %v412 = vadd.f32 %v91, %v411
  %v413 = vpop.f32.mrf.mxu0
  %414 = vmatprep.mubr.f32.mxu0 0.0
  %415 = vmatmul.mubr.f32.gmra.mxu0 %v146
  %v416 = vpop.f32.mrf.mxu0
  %v417 = vadd.f32 %v91, %v416
  %v418 = vpop.f32.mrf.mxu0
  %419 = vmatprep.mubr.f32.mxu0 0.0
  %420 = vmatmul.mubr.f32.gmra.mxu0 %v149
  %v421 = vpop.f32.mrf.mxu0
  %v422 = vadd.f32 %v91, %v421
  %v423 = vpop.f32.mrf.mxu0
  %424 = vmatprep.mubr.f32.mxu0 0.0
  %425 = vmatmul.mubr.f32.gmra.mxu0 %v152
  %v426 = vpop.f32.mrf.mxu0
  %v427 = vadd.f32 %v91, %v426
  %v428 = vpop.f32.mrf.mxu0
  %429 = vmatprep.mubr.f32.mxu0 0.0
  %430 = vmatmul.mubr.f32.gmra.mxu0 %v155
  %v431 = vpop.f32.mrf.mxu0
  %v432 = vadd.f32 %v91, %v431
  %v433 = vpop.f32.mrf.mxu0
  %434 = vmatprep.mubr.f32.mxu0 0.0
  %435 = vmatmul.mubr.f32.gmra.mxu0 %v158
  %v436 = vpop.f32.mrf.mxu0
  %v437 = vadd.f32 %v91, %v436
  %v438 = vpop.f32.mrf.mxu0
  %439 = vmatprep.mubr.f32.mxu0 0.0
  %440 = vmatmul.mubr.f32.gmra.mxu0 %v161
  %v441 = vpop.f32.mrf.mxu0
  %v442 = vadd.f32 %v91, %v441
  %v443 = vpop.f32.mrf.mxu0
  %444 = vmatprep.mubr.f32.mxu0 0.0
  %445 = vmatmul.mubr.f32.gmra.mxu0 %v164
  %v446 = vpop.f32.mrf.mxu0
  %v447 = vadd.f32 %v91, %v446
  %v448 = vpop.f32.mrf.mxu0
  %449 = vmatprep.mubr.f32.mxu0 0.0
  %450 = vmatmul.mubr.f32.gmra.mxu0 %v167
  %v451 = vpop.f32.mrf.mxu0
  %v452 = vadd.f32 %v91, %v451
  %v453 = vpop.f32.mrf.mxu0
  %454 = vmatprep.mubr.f32.mxu0 0.0
  %455 = vmatmul.mubr.f32.gmra.mxu0 %v170
  %v456 = vpop.f32.mrf.mxu0
  %v457 = vadd.f32 %v91, %v456
  %v458 = vpop.f32.mrf.mxu0
  %459 = vmatprep.mubr.f32.mxu0 0.0
  %460 = vmatmul.mubr.f32.gmra.mxu0 %v173
  %v461 = vpop.f32.mrf.mxu0
  %v462 = vadd.f32 %v91, %v461
  %v463 = vpop.f32.mrf.mxu0
  %464 = vmatprep.mubr.f32.mxu0 0.0
  %465 = vmatmul.mubr.f32.gmra.mxu0 %v176
  %v466 = vpop.f32.mrf.mxu0
  %v467 = vadd.f32 %v91, %v466
  %v468 = vpop.f32.mrf.mxu0
  %469 = vmatprep.mubr.f32.mxu0 0.0
  %470 = vmatmul.mubr.f32.gmra.mxu0 %v179
  %v471 = vpop.f32.mrf.mxu0
  %v472 = vadd.f32 %v91, %v471
  %v473 = vpop.f32.mrf.mxu0
  %474 = vmatprep.mubr.f32.mxu0 0.0
  %475 = vmatmul.mubr.f32.gmra.mxu0 %v182
  %v476 = vpop.f32.mrf.mxu0
  %v477 = vadd.f32 %v91, %v476
  %v478 = vpop.f32.mrf.mxu0
  %479 = vmatprep.mubr.f32.mxu0 0.0
  %480 = vmatmul.mubr.f32.gmra.mxu0 %v185
  %v481 = vpop.f32.mrf.mxu0
  %v482 = vadd.f32 %v91, %v481
  %v483 = vpop.f32.mrf.mxu0
  %484 = vmatprep.mubr.f32.mxu0 0.0
  %485 = vmatmul.mubr.f32.gmra.mxu0 %v188
  %v486 = vpop.f32.mrf.mxu0
  %v487 = vadd.f32 %v91, %v486
  %v488 = vpop.f32.mrf.mxu0
  %489 = vmatprep.mubr.f32.mxu0 0.0
  %490 = vmatmul.mubr.f32.gmra.mxu0 %v191
  %v491 = vpop.f32.mrf.mxu0
  %v492 = vadd.f32 %v91, %v491
  %v493 = vpop.f32.mrf.mxu0
  %494 = vmatprep.mubr.f32.mxu0 0.0
  %495 = vmatmul.mubr.f32.gmra.mxu0 %v194
  %v496 = vpop.f32.mrf.mxu0
  %v497 = vadd.f32 %v91, %v496
  %v498 = vpop.f32.mrf.mxu0
  %499 = vmatprep.mubr.f32.mxu0 0.0
  %500 = vmatmul.mubr.f32.gmra.mxu0 %v197
  %v501 = vpop.f32.mrf.mxu0
  %v502 = vadd.f32 %v91, %v501
  %v503 = vpop.f32.mrf.mxu0
  %504 = vmatprep.mubr.f32.mxu0 0.0
  %505 = vmatmul.mubr.f32.gmra.mxu0 %v200
  %v506 = vpop.f32.mrf.mxu0
  %v507 = vadd.f32 %v91, %v506
  %v508 = vpop.f32.mrf.mxu0
  %509 = vmatprep.mubr.f32.mxu0 0.0
  %510 = vmatmul.mubr.f32.gmra.mxu0 %v203
  %v511 = vpop.f32.mrf.mxu0
  %v512 = vadd.f32 %v91, %v511
  %v513 = vpop.f32.mrf.mxu0
  %514 = vmatprep.mubr.f32.mxu0 0.0
  %515 = vmatmul.mubr.f32.gmra.mxu0 %v206
  %v516 = vpop.f32.mrf.mxu0
  %v517 = vadd.f32 %v91, %v516
  %v518 = vpop.f32.mrf.mxu0
  %519 = vmatprep.mubr.f32.mxu0 0.0
  %520 = vmatmul.mubr.f32.gmra.mxu0 %v209
  %v521 = vpop.f32.mrf.mxu0
  %v522 = vadd.f32 %v91, %v521
  %v523 = vpop.f32.mrf.mxu0
  %524 = vmatprep.mubr.f32.mxu0 0.0
  %525 = vmatmul.mubr.f32.gmra.mxu0 %v212
  %v526 = vpop.f32.mrf.mxu0
  %v527 = vadd.f32 %v91, %v526
  %v528 = vpop.f32.mrf.mxu0
  %529 = vmatprep.mubr.f32.mxu0 0.0
  %530 = vmatmul.mubr.f32.gmra.mxu0 %v215
  %v531 = vpop.f32.mrf.mxu0
  %v532 = vadd.f32 %v91, %v531
  %v533 = vpop.f32.mrf.mxu0
  %534 = vmatprep.mubr.f32.mxu0 0.0
  %535 = vmatmul.mubr.f32.gmra.mxu0 %v218
  %v536 = vpop.f32.mrf.mxu0
  %v537 = vadd.f32 %v91, %v536
  %v538 = vpop.f32.mrf.mxu0
  %539 = vmatprep.mubr.f32.mxu0 0.0
  %540 = vmatmul.mubr.f32.gmra.mxu0 %v221
  %v541 = vpop.f32.mrf.mxu0
  %v542 = vadd.f32 %v91, %v541
  %v543 = vpop.f32.mrf.mxu0
  %544 = vmatprep.mubr.f32.mxu0 0.0
  %545 = vmatmul.mubr.f32.gmra.mxu0 %v224
  %v546 = vpop.f32.mrf.mxu0
  %v547 = vadd.f32 %v91, %v546
  %v548 = vpop.f32.mrf.mxu0
  %549 = vmatprep.mubr.f32.mxu0 0.0
  %550 = vmatmul.mubr.f32.gmra.mxu0 %v227
  %v551 = vpop.f32.mrf.mxu0
  %v552 = vadd.f32 %v91, %v551
  %v553 = vpop.f32.mrf.mxu0
  %554 = vmatprep.mubr.f32.mxu0 0.0
  %555 = vmatmul.mubr.f32.gmra.mxu0 %v230
  %v556 = vpop.f32.mrf.mxu0
  %v557 = vadd.f32 %v91, %v556
  %v558 = vpop.f32.mrf.mxu0
  %559 = vmatprep.mubr.f32.mxu0 0.0
  %560 = vmatmul.mubr.f32.gmra.mxu0 %v233
  %v561 = vpop.f32.mrf.mxu0
  %v562 = vadd.f32 %v91, %v561
  %v563 = vpop.f32.mrf.mxu0
  %564 = vmatprep.mubr.f32.mxu0 0.0
  %565 = vmatmul.mubr.f32.gmra.mxu0 %v236
  %v566 = vpop.f32.mrf.mxu0
  %v567 = vadd.f32 %v91, %v566
  %v568 = vpop.f32.mrf.mxu0
  %569 = vmatprep.mubr.f32.mxu0 0.0
  %570 = vmatmul.mubr.f32.gmra.mxu0 %v239
  %v571 = vpop.f32.mrf.mxu0
  %v572 = vadd.f32 %v91, %v571
  %v573 = vpop.f32.mrf.mxu0
  %574 = vmatprep.mubr.f32.mxu0 0.0
  %575 = vmatmul.mubr.f32.gmra.mxu0 %v242
  %v576 = vpop.f32.mrf.mxu0
  %v577 = vadd.f32 %v91, %v576
  %v578 = vpop.f32.mrf.mxu0
  %579 = vmatprep.mubr.f32.mxu0 0.0
  %580 = vmatmul.mubr.f32.gmra.mxu0 %v245
  %v581 = vpop.f32.mrf.mxu0
  %v582 = vadd.f32 %v91, %v581
  %v583 = vpop.f32.mrf.mxu0
  %584 = vmatprep.mubr.f32.mxu0 0.0
  %585 = vmatmul.mubr.f32.gmra.mxu0 %v248
  %v586 = vpop.f32.mrf.mxu0
  %v587 = vadd.f32 %v91, %v586
  %v588 = vpop.f32.mrf.mxu0
  %589 = vmatprep.mubr.f32.mxu0 0.0
  %590 = vmatmul.mubr.f32.gmra.mxu0 %v251
  %v591 = vpop.f32.mrf.mxu0
  %v592 = vadd.f32 %v91, %v591
  %v593 = vpop.f32.mrf.mxu0
  %594 = vmatprep.mubr.f32.mxu0 0.0
  %595 = vmatmul.mubr.f32.gmra.mxu0 %v254
  %v596 = vpop.f32.mrf.mxu0
  %v597 = vadd.f32 %v91, %v596
  %v598 = vpop.f32.mrf.mxu0
  %599 = vmatprep.mubr.f32.mxu0 0.0
  %600 = vmatmul.mubr.f32.gmra.mxu0 %v257
  %v601 = vpop.f32.mrf.mxu0
  %v602 = vadd.f32 %v91, %v601
  %v603 = vpop.f32.mrf.mxu0
  %604 = vmatprep.mubr.f32.mxu0 0.0
  %605 = vmatmul.mubr.f32.gmra.mxu0 %v260
  %v606 = vpop.f32.mrf.mxu0
  %v607 = vadd.f32 %v91, %v606
  %v608 = vpop.f32.mrf.mxu0
  %609 = vmatprep.mubr.f32.mxu0 0.0
  %610 = vmatmul.mubr.f32.gmra.mxu0 %v263
  %v611 = vpop.f32.mrf.mxu0
  %v612 = vadd.f32 %v91, %v611
  %v613 = vpop.f32.mrf.mxu0
  %614 = vdwg.mxu0
  %v615 = vld [vmem:[%s3] sm:$0xff]
  %v616 = vld [vmem:[%s3 + $0x8] sm:$0xff]
  %v617 = vld [vmem:[%s3 + $0x10] sm:$0xff]
  %v618 = vld [vmem:[%s3 + $0x18] sm:$0xff]
  %v619 = vld [vmem:[%s3 + $0x20] sm:$0xff]
  %v620 = vld [vmem:[%s3 + $0x28] sm:$0xff]
  %v621 = vld [vmem:[%s3 + $0x30] sm:$0xff]
  %v622 = vld [vmem:[%s3 + $0x38] sm:$0xff]
  %v623 = vld [vmem:[%s3 + $0x40] sm:$0xff]
  %v624 = vld [vmem:[%s3 + $0x48] sm:$0xff]
  %v625 = vld [vmem:[%s3 + $0x50] sm:$0xff]
  %v626 = vld [vmem:[%s3 + $0x58] sm:$0xff]
  %v627 = vld [vmem:[%s3 + $0x60] sm:$0xff]
  %v628 = vld [vmem:[%s3 + $0x68] sm:$0xff]
  %v629 = vld [vmem:[%s3 + $0x70] sm:$0xff]
  %v630 = vld [vmem:[%s3 + $0x78] sm:$0xff]
  %v631 = vld [vmem:[%s3 + $0x80] sm:$0xff]
  %v632 = vld [vmem:[%s3 + $0x88] sm:$0xff]
  %v633 = vld [vmem:[%s3 + $0x90] sm:$0xff]
  %v634 = vld [vmem:[%s3 + $0x98] sm:$0xff]
  %v635 = vld [vmem:[%s3 + $0xa0] sm:$0xff]
  %v636 = vld [vmem:[%s3 + $0xa8] sm:$0xff]
  %v637 = vld [vmem:[%s3 + $0xb0] sm:$0xff]
  %v638 = vld [vmem:[%s3 + $0xb8] sm:$0xff]
  %v639 = vld [vmem:[%s3 + $0xc0] sm:$0xff]
  %v640 = vld [vmem:[%s3 + $0xc8] sm:$0xff]
  %v641 = vld [vmem:[%s3 + $0xd0] sm:$0xff]
  %v642 = vld [vmem:[%s3 + $0xd8] sm:$0xff]
  %v643 = vld [vmem:[%s3 + $0xe0] sm:$0xff]
  %v644 = vld [vmem:[%s3 + $0xe8] sm:$0xff]
  %v645 = vld [vmem:[%s3 + $0xf0] sm:$0xff]
  %v646 = vld [vmem:[%s3 + $0xf8] sm:$0xff]
  %v647 = vld [vmem:[%s3 + $0x100] sm:$0xff]
  %v648 = vld [vmem:[%s3 + $0x108] sm:$0xff]
  %v649 = vld [vmem:[%s3 + $0x110] sm:$0xff]
  %v650 = vld [vmem:[%s3 + $0x118] sm:$0xff]
  %v651 = vld [vmem:[%s3 + $0x120] sm:$0xff]
  %v652 = vld [vmem:[%s3 + $0x128] sm:$0xff]
  %v653 = vld [vmem:[%s3 + $0x130] sm:$0xff]
  %v654 = vld [vmem:[%s3 + $0x138] sm:$0xff]
  %v655 = vld [vmem:[%s3 + $0x140] sm:$0xff]
  %v656 = vld [vmem:[%s3 + $0x148] sm:$0xff]
  %v657 = vld [vmem:[%s3 + $0x150] sm:$0xff]
  %v658 = vld [vmem:[%s3 + $0x158] sm:$0xff]
  %v659 = vld [vmem:[%s3 + $0x160] sm:$0xff]
  %v660 = vld [vmem:[%s3 + $0x168] sm:$0xff]
  %v661 = vld [vmem:[%s3 + $0x170] sm:$0xff]
  %v662 = vld [vmem:[%s3 + $0x178] sm:$0xff]
  %v663 = vld [vmem:[%s3 + $0x180] sm:$0xff]
  %v664 = vld [vmem:[%s3 + $0x188] sm:$0xff]
  %v665 = vld [vmem:[%s3 + $0x190] sm:$0xff]
  %v666 = vld [vmem:[%s3 + $0x198] sm:$0xff]
  %v667 = vld [vmem:[%s3 + $0x1a0] sm:$0xff]
  %v668 = vld [vmem:[%s3 + $0x1a8] sm:$0xff]
  %v669 = vld [vmem:[%s3 + $0x1b0] sm:$0xff]
  %v670 = vld [vmem:[%s3 + $0x1b8] sm:$0xff]
  %v671 = vld [vmem:[%s3 + $0x1c0] sm:$0xff]
  %v672 = vld [vmem:[%s4] sm:$0xff]
  %v673 = vld [vmem:[%s4 + $0x8] sm:$0xff]
  %v674 = vld [vmem:[%s4 + $0x10] sm:$0xff]
  %v675 = vld [vmem:[%s4 + $0x18] sm:$0xff]
  %v676 = vld [vmem:[%s4 + $0x20] sm:$0xff]
  %v677 = vld [vmem:[%s4 + $0x28] sm:$0xff]
  %v678 = vld [vmem:[%s4 + $0x30] sm:$0xff]
  %v679 = vld [vmem:[%s4 + $0x38] sm:$0xff]
  %v680 = vld [vmem:[%s4 + $0x40] sm:$0xff]
  %v681 = vld [vmem:[%s4 + $0x48] sm:$0xff]
  %v682 = vld [vmem:[%s4 + $0x50] sm:$0xff]
  %v683 = vld [vmem:[%s4 + $0x58] sm:$0xff]
  %v684 = vld [vmem:[%s4 + $0x60] sm:$0xff]
  %v685 = vld [vmem:[%s4 + $0x68] sm:$0xff]
  %v686 = vld [vmem:[%s4 + $0x70] sm:$0xff]
  %v687 = vld [vmem:[%s4 + $0x78] sm:$0xff]
  %v688 = vld [vmem:[%s4 + $0x80] sm:$0xff]
  %v689 = vld [vmem:[%s4 + $0x88] sm:$0xff]
  %v690 = vld [vmem:[%s4 + $0x90] sm:$0xff]
  %v691 = vld [vmem:[%s4 + $0x98] sm:$0xff]
  %v692 = vld [vmem:[%s4 + $0xa0] sm:$0xff]
  %v693 = vld [vmem:[%s4 + $0xa8] sm:$0xff]
  %v694 = vld [vmem:[%s4 + $0xb0] sm:$0xff]
  %v695 = vld [vmem:[%s4 + $0xb8] sm:$0xff]
  %v696 = vld [vmem:[%s4 + $0xc0] sm:$0xff]
  %v697 = vld [vmem:[%s4 + $0xc8] sm:$0xff]
  %v698 = vld [vmem:[%s4 + $0xd0] sm:$0xff]
  %v699 = vld [vmem:[%s4 + $0xd8] sm:$0xff]
  %v700 = vld [vmem:[%s4 + $0xe0] sm:$0xff]
  %v701 = vld [vmem:[%s4 + $0xe8] sm:$0xff]
  %v702 = vld [vmem:[%s4 + $0xf0] sm:$0xff]
  %v703 = vld [vmem:[%s4 + $0xf8] sm:$0xff]
  %v704 = vld [vmem:[%s4 + $0x100] sm:$0xff]
  %v705 = vld [vmem:[%s4 + $0x108] sm:$0xff]
  %v706 = vld [vmem:[%s4 + $0x110] sm:$0xff]
  %v707 = vld [vmem:[%s4 + $0x118] sm:$0xff]
  %v708 = vld [vmem:[%s4 + $0x120] sm:$0xff]
  %v709 = vld [vmem:[%s4 + $0x128] sm:$0xff]
  %v710 = vld [vmem:[%s4 + $0x130] sm:$0xff]
  %v711 = vld [vmem:[%s4 + $0x138] sm:$0xff]
  %v712 = vld [vmem:[%s4 + $0x140] sm:$0xff]
  %v713 = vld [vmem:[%s4 + $0x148] sm:$0xff]
  %v714 = vld [vmem:[%s4 + $0x150] sm:$0xff]
  %v715 = vld [vmem:[%s4 + $0x158] sm:$0xff]
  %v716 = vld [vmem:[%s4 + $0x160] sm:$0xff]
  %v717 = vld [vmem:[%s4 + $0x168] sm:$0xff]
  %v718 = vld [vmem:[%s4 + $0x170] sm:$0xff]
  %v719 = vld [vmem:[%s4 + $0x178] sm:$0xff]
  %v720 = vld [vmem:[%s4 + $0x180] sm:$0xff]
  %v721 = vld [vmem:[%s4 + $0x188] sm:$0xff]
  %v722 = vld [vmem:[%s4 + $0x190] sm:$0xff]
  %v723 = vld [vmem:[%s4 + $0x198] sm:$0xff]
  %v724 = vld [vmem:[%s4 + $0x1a0] sm:$0xff]
  %v725 = vld [vmem:[%s4 + $0x1a8] sm:$0xff]
  %v726 = vld [vmem:[%s4 + $0x1b0] sm:$0xff]
  %v727 = vld [vmem:[%s4 + $0x1b8] sm:$0xff]
  %v728 = vld [vmem:[%s4 + $0x1c0] sm:$0xff]
  %v729 = vld [vmem:[%s5] sm:$0xff]
  %v730 = vld [vmem:[%s5 + $0x8] sm:$0xff]
  %v731 = vld [vmem:[%s5 + $0x10] sm:$0xff]
  %v732 = vld [vmem:[%s5 + $0x18] sm:$0xff]
  %v733 = vld [vmem:[%s5 + $0x20] sm:$0xff]
  %v734 = vld [vmem:[%s5 + $0x28] sm:$0xff]
  %v735 = vld [vmem:[%s5 + $0x30] sm:$0xff]
  %v736 = vld [vmem:[%s5 + $0x38] sm:$0xff]
  %v737 = vld [vmem:[%s5 + $0x40] sm:$0xff]
  %v738 = vld [vmem:[%s5 + $0x48] sm:$0xff]
  %v739 = vld [vmem:[%s5 + $0x50] sm:$0xff]
  %v740 = vld [vmem:[%s5 + $0x58] sm:$0xff]
  %v741 = vld [vmem:[%s5 + $0x60] sm:$0xff]
  %v742 = vld [vmem:[%s5 + $0x68] sm:$0xff]
  %v743 = vld [vmem:[%s5 + $0x70] sm:$0xff]
  %v744 = vld [vmem:[%s5 + $0x78] sm:$0xff]
  %v745 = vld [vmem:[%s5 + $0x80] sm:$0xff]
  %v746 = vld [vmem:[%s5 + $0x88] sm:$0xff]
  %v747 = vld [vmem:[%s5 + $0x90] sm:$0xff]
  %v748 = vld [vmem:[%s5 + $0x98] sm:$0xff]
  %v749 = vld [vmem:[%s5 + $0xa0] sm:$0xff]
  %v750 = vld [vmem:[%s5 + $0xa8] sm:$0xff]
  %v751 = vld [vmem:[%s5 + $0xb0] sm:$0xff]
  %v752 = vld [vmem:[%s5 + $0xb8] sm:$0xff]
  %v753 = vld [vmem:[%s5 + $0xc0] sm:$0xff]
  %v754 = vld [vmem:[%s5 + $0xc8] sm:$0xff]
  %v755 = vld [vmem:[%s5 + $0xd0] sm:$0xff]
  %v756 = vld [vmem:[%s5 + $0xd8] sm:$0xff]
  %v757 = vld [vmem:[%s5 + $0xe0] sm:$0xff]
  %v758 = vld [vmem:[%s5 + $0xe8] sm:$0xff]
  %v759 = vld [vmem:[%s5 + $0xf0] sm:$0xff]
  %v760 = vld [vmem:[%s5 + $0xf8] sm:$0xff]
  %v761 = vld [vmem:[%s5 + $0x100] sm:$0xff]
  %v762 = vld [vmem:[%s5 + $0x108] sm:$0xff]
  %v763 = vld [vmem:[%s5 + $0x110] sm:$0xff]
  %v764 = vld [vmem:[%s5 + $0x118] sm:$0xff]
  %v765 = vld [vmem:[%s5 + $0x120] sm:$0xff]
  %v766 = vld [vmem:[%s5 + $0x128] sm:$0xff]
  %v767 = vld [vmem:[%s5 + $0x130] sm:$0xff]
  %v768 = vld [vmem:[%s5 + $0x138] sm:$0xff]
  %v769 = vld [vmem:[%s5 + $0x140] sm:$0xff]
  %v770 = vld [vmem:[%s5 + $0x148] sm:$0xff]
  %v771 = vld [vmem:[%s5 + $0x150] sm:$0xff]
  %v772 = vld [vmem:[%s5 + $0x158] sm:$0xff]
  %v773 = vld [vmem:[%s5 + $0x160] sm:$0xff]
  %v774 = vld [vmem:[%s5 + $0x168] sm:$0xff]
  %v775 = vld [vmem:[%s5 + $0x170] sm:$0xff]
  %v776 = vld [vmem:[%s5 + $0x178] sm:$0xff]
  %v777 = vld [vmem:[%s5 + $0x180] sm:$0xff]
  %v778 = vld [vmem:[%s5 + $0x188] sm:$0xff]
  %v779 = vld [vmem:[%s5 + $0x190] sm:$0xff]
  %v780 = vld [vmem:[%s5 + $0x198] sm:$0xff]
  %v781 = vld [vmem:[%s5 + $0x1a0] sm:$0xff]
  %v782 = vld [vmem:[%s5 + $0x1a8] sm:$0xff]
  %v783 = vld [vmem:[%s5 + $0x1b0] sm:$0xff]
  %v784 = vld [vmem:[%s5 + $0x1b8] sm:$0xff]
  %v785 = vld [vmem:[%s5 + $0x1c0] sm:$0xff]
  %v786 = vsub.f32 0.0, %v332
  %v787 = vsub.f32 0.0, %v337
  %v788 = vsub.f32 0.0, %v342
  %v789 = vsub.f32 0.0, %v347
  %v790 = vsub.f32 0.0, %v352
  %v791 = vsub.f32 0.0, %v357
  %v792 = vsub.f32 0.0, %v362
  %v793 = vsub.f32 0.0, %v367
  %v794 = vsub.f32 0.0, %v372
  %v795 = vsub.f32 0.0, %v377
  %v796 = vsub.f32 0.0, %v382
  %v797 = vsub.f32 0.0, %v387
  %v798 = vsub.f32 0.0, %v392
  %v799 = vsub.f32 0.0, %v397
  %v800 = vsub.f32 0.0, %v402
  %v801 = vsub.f32 0.0, %v407
  %v802 = vsub.f32 0.0, %v412
  %v803 = vsub.f32 0.0, %v417
  %v804 = vsub.f32 0.0, %v422
  %v805 = vsub.f32 0.0, %v427
  %v806 = vsub.f32 0.0, %v432
  %v807 = vsub.f32 0.0, %v437
  %v808 = vsub.f32 0.0, %v442
  %v809 = vsub.f32 0.0, %v447
  %v810 = vsub.f32 0.0, %v452
  %v811 = vsub.f32 0.0, %v457
  %v812 = vsub.f32 0.0, %v462
  %v813 = vsub.f32 0.0, %v467
  %v814 = vsub.f32 0.0, %v472
  %v815 = vsub.f32 0.0, %v477
  %v816 = vsub.f32 0.0, %v482
  %v817 = vsub.f32 0.0, %v487
  %v818 = vsub.f32 0.0, %v492
  %v819 = vsub.f32 0.0, %v497
  %v820 = vsub.f32 0.0, %v502
  %v821 = vsub.f32 0.0, %v507
  %v822 = vsub.f32 0.0, %v512
  %v823 = vsub.f32 0.0, %v517
  %v824 = vsub.f32 0.0, %v522
  %v825 = vsub.f32 0.0, %v527
  %v826 = vsub.f32 0.0, %v532
  %v827 = vsub.f32 0.0, %v537
  %v828 = vsub.f32 0.0, %v542
  %v829 = vsub.f32 0.0, %v547
  %v830 = vsub.f32 0.0, %v552
  %v831 = vsub.f32 0.0, %v557
  %v832 = vsub.f32 0.0, %v562
  %v833 = vsub.f32 0.0, %v567
  %v834 = vsub.f32 0.0, %v572
  %v835 = vsub.f32 0.0, %v577
  %v836 = vsub.f32 0.0, %v582
  %v837 = vsub.f32 0.0, %v587
  %v838 = vsub.f32 0.0, %v592
  %v839 = vsub.f32 0.0, %v597
  %v840 = vsub.f32 0.0, %v602
  %v841 = vsub.f32 0.0, %v607
  %v842 = vsub.f32 0.0, %v612
  %v843 = vmul.f32 %v786, 1.442695
  %v844 = vpow.pop %v843
  %v845 = vmul.f32 %v787, 1.442695
  %v846 = vpow.pop %v845
  %v847 = vmul.f32 %v788, 1.442695
  %v848 = vpow.pop %v847
  %v849 = vmul.f32 %v789, 1.442695
  %v850 = vpow.pop %v849
  %v851 = vmul.f32 %v790, 1.442695
  %v852 = vpow.pop %v851
  %v853 = vmul.f32 %v791, 1.442695
  %v854 = vpow.pop %v853
  %v855 = vmul.f32 %v792, 1.442695
  %v856 = vpow.pop %v855
  %v857 = vmul.f32 %v793, 1.442695
  %v858 = vpow.pop %v857
  %v859 = vmul.f32 %v794, 1.442695
  %v860 = vpow.pop %v859
  %v861 = vmul.f32 %v795, 1.442695
  %v862 = vpow.pop %v861
  %v863 = vmul.f32 %v796, 1.442695
  %v864 = vpow.pop %v863
  %v865 = vmul.f32 %v797, 1.442695
  %v866 = vpow.pop %v865
  %v867 = vmul.f32 %v798, 1.442695
  %v868 = vpow.pop %v867
  %v869 = vmul.f32 %v799, 1.442695
  %v870 = vpow.pop %v869
  %v871 = vmul.f32 %v800, 1.442695
  %v872 = vpow.pop %v871
  %v873 = vmul.f32 %v801, 1.442695
  %v874 = vpow.pop %v873
  %v875 = vmul.f32 %v802, 1.442695
  %v876 = vpow.pop %v875
  %v877 = vmul.f32 %v803, 1.442695
  %v878 = vpow.pop %v877
  %v879 = vmul.f32 %v804, 1.442695
  %v880 = vpow.pop %v879
  %v881 = vmul.f32 %v805, 1.442695
  %v882 = vpow.pop %v881
  %v883 = vmul.f32 %v806, 1.442695
  %v884 = vpow.pop %v883
  %v885 = vmul.f32 %v807, 1.442695
  %v886 = vpow.pop %v885
  %v887 = vmul.f32 %v808, 1.442695
  %v888 = vpow.pop %v887
  %v889 = vmul.f32 %v809, 1.442695
  %v890 = vpow.pop %v889
  %v891 = vmul.f32 %v810, 1.442695
  %v892 = vpow.pop %v891
  %v893 = vmul.f32 %v811, 1.442695
  %v894 = vpow.pop %v893
  %v895 = vmul.f32 %v812, 1.442695
  %v896 = vpow.pop %v895
  %v897 = vmul.f32 %v813, 1.442695
  %v898 = vpow.pop %v897
  %v899 = vmul.f32 %v814, 1.442695
  %v900 = vpow.pop %v899
  %v901 = vmul.f32 %v815, 1.442695
  %v902 = vpow.pop %v901
  %v903 = vmul.f32 %v816, 1.442695
  %v904 = vpow.pop %v903
  %v905 = vmul.f32 %v817, 1.442695
  %v906 = vpow.pop %v905
  %v907 = vmul.f32 %v818, 1.442695
  %v908 = vpow.pop %v907
  %v909 = vmul.f32 %v819, 1.442695
  %v910 = vpow.pop %v909
  %v911 = vmul.f32 %v820, 1.442695
  %v912 = vpow.pop %v911
  %v913 = vmul.f32 %v821, 1.442695
  %v914 = vpow.pop %v913
  %v915 = vmul.f32 %v822, 1.442695
  %v916 = vpow.pop %v915
  %v917 = vmul.f32 %v823, 1.442695
  %v918 = vpow.pop %v917
  %v919 = vmul.f32 %v824, 1.442695
  %v920 = vpow.pop %v919
  %v921 = vmul.f32 %v825, 1.442695
  %v922 = vpow.pop %v921
  %v923 = vmul.f32 %v826, 1.442695
  %v924 = vpow.pop %v923
  %v925 = vmul.f32 %v827, 1.442695
  %v926 = vpow.pop %v925
  %v927 = vmul.f32 %v828, 1.442695
  %v928 = vpow.pop %v927
  %v929 = vmul.f32 %v829, 1.442695
  %v930 = vpow.pop %v929
  %v931 = vmul.f32 %v830, 1.442695
  %v932 = vpow.pop %v931
  %v933 = vmul.f32 %v831, 1.442695
  %v934 = vpow.pop %v933
  %v935 = vmul.f32 %v832, 1.442695
  %v936 = vpow.pop %v935
  %v937 = vmul.f32 %v833, 1.442695
  %v938 = vpow.pop %v937
  %v939 = vmul.f32 %v834, 1.442695
  %v940 = vpow.pop %v939
  %v941 = vmul.f32 %v835, 1.442695
  %v942 = vpow.pop %v941
  %v943 = vmul.f32 %v836, 1.442695
  %v944 = vpow.pop %v943
  %v945 = vmul.f32 %v837, 1.442695
  %v946 = vpow.pop %v945
  %v947 = vmul.f32 %v838, 1.442695
  %v948 = vpow.pop %v947
  %v949 = vmul.f32 %v839, 1.442695
  %v950 = vpow.pop %v949
  %v951 = vmul.f32 %v840, 1.442695
  %v952 = vpow.pop %v951
  %v953 = vmul.f32 %v841, 1.442695
  %v954 = vpow.pop %v953
  %v955 = vmul.f32 %v842, 1.442695
  %v956 = vpow.pop %v955
  %v957 = vadd.f32 %v844, 1.0
  %v958 = vadd.f32 %v846, 1.0
  %v959 = vadd.f32 %v848, 1.0
  %v960 = vadd.f32 %v850, 1.0
  %v961 = vadd.f32 %v852, 1.0
  %v962 = vadd.f32 %v854, 1.0
  %v963 = vadd.f32 %v856, 1.0
  %v964 = vadd.f32 %v858, 1.0
  %v965 = vadd.f32 %v860, 1.0
  %v966 = vadd.f32 %v862, 1.0
  %v967 = vadd.f32 %v864, 1.0
  %v968 = vadd.f32 %v866, 1.0
  %v969 = vadd.f32 %v868, 1.0
  %v970 = vadd.f32 %v870, 1.0
  %v971 = vadd.f32 %v872, 1.0
  %v972 = vadd.f32 %v874, 1.0
  %v973 = vadd.f32 %v876, 1.0
  %v974 = vadd.f32 %v878, 1.0
  %v975 = vadd.f32 %v880, 1.0
  %v976 = vadd.f32 %v882, 1.0
  %v977 = vadd.f32 %v884, 1.0
  %v978 = vadd.f32 %v886, 1.0
  %v979 = vadd.f32 %v888, 1.0
  %v980 = vadd.f32 %v890, 1.0
  %v981 = vadd.f32 %v892, 1.0
  %v982 = vadd.f32 %v894, 1.0
  %v983 = vadd.f32 %v896, 1.0
  %v984 = vadd.f32 %v898, 1.0
  %v985 = vadd.f32 %v900, 1.0
  %v986 = vadd.f32 %v902, 1.0
  %v987 = vadd.f32 %v904, 1.0
  %v988 = vadd.f32 %v906, 1.0
  %v989 = vadd.f32 %v908, 1.0
  %v990 = vadd.f32 %v910, 1.0
  %v991 = vadd.f32 %v912, 1.0
  %v992 = vadd.f32 %v914, 1.0
  %v993 = vadd.f32 %v916, 1.0
  %v994 = vadd.f32 %v918, 1.0
  %v995 = vadd.f32 %v920, 1.0
  %v996 = vadd.f32 %v922, 1.0
  %v997 = vadd.f32 %v924, 1.0
  %v998 = vadd.f32 %v926, 1.0
  %v999 = vadd.f32 %v928, 1.0
  %v1000 = vadd.f32 %v930, 1.0
  %v1001 = vadd.f32 %v932, 1.0
  %v1002 = vadd.f32 %v934, 1.0
  %v1003 = vadd.f32 %v936, 1.0
  %v1004 = vadd.f32 %v938, 1.0
  %v1005 = vadd.f32 %v940, 1.0
  %v1006 = vadd.f32 %v942, 1.0
  %v1007 = vadd.f32 %v944, 1.0
  %v1008 = vadd.f32 %v946, 1.0
  %v1009 = vadd.f32 %v948, 1.0
  %v1010 = vadd.f32 %v950, 1.0
  %v1011 = vadd.f32 %v952, 1.0
  %v1012 = vadd.f32 %v954, 1.0
  %v1013 = vadd.f32 %v956, 1.0
  %v1014 = vrcp.pop %v957
  %v1015 = vrcp.pop %v958
  %v1016 = vrcp.pop %v959
  %v1017 = vrcp.pop %v960
  %v1018 = vrcp.pop %v961
  %v1019 = vrcp.pop %v962
  %v1020 = vrcp.pop %v963
  %v1021 = vrcp.pop %v964
  %v1022 = vrcp.pop %v965
  %v1023 = vrcp.pop %v966
  %v1024 = vrcp.pop %v967
  %v1025 = vrcp.pop %v968
  %v1026 = vrcp.pop %v969
  %v1027 = vrcp.pop %v970
  %v1028 = vrcp.pop %v971
  %v1029 = vrcp.pop %v972
  %v1030 = vrcp.pop %v973
  %v1031 = vrcp.pop %v974
  %v1032 = vrcp.pop %v975
  %v1033 = vrcp.pop %v976
  %v1034 = vrcp.pop %v977
  %v1035 = vrcp.pop %v978
  %v1036 = vrcp.pop %v979
  %v1037 = vrcp.pop %v980
  %v1038 = vrcp.pop %v981
  %v1039 = vrcp.pop %v982
  %v1040 = vrcp.pop %v983
  %v1041 = vrcp.pop %v984
  %v1042 = vrcp.pop %v985
  %v1043 = vrcp.pop %v986
  %v1044 = vrcp.pop %v987
  %v1045 = vrcp.pop %v988
  %v1046 = vrcp.pop %v989
  %v1047 = vrcp.pop %v990
  %v1048 = vrcp.pop %v991
  %v1049 = vrcp.pop %v992
  %v1050 = vrcp.pop %v993
  %v1051 = vrcp.pop %v994
  %v1052 = vrcp.pop %v995
  %v1053 = vrcp.pop %v996
  %v1054 = vrcp.pop %v997
  %v1055 = vrcp.pop %v998
  %v1056 = vrcp.pop %v999
  %v1057 = vrcp.pop %v1000
  %v1058 = vrcp.pop %v1001
  %v1059 = vrcp.pop %v1002
  %v1060 = vrcp.pop %v1003
  %v1061 = vrcp.pop %v1004
  %v1062 = vrcp.pop %v1005
  %v1063 = vrcp.pop %v1006
  %v1064 = vrcp.pop %v1007
  %v1065 = vrcp.pop %v1008
  %v1066 = vrcp.pop %v1009
  %v1067 = vrcp.pop %v1010
  %v1068 = vrcp.pop %v1011
  %v1069 = vrcp.pop %v1012
  %v1070 = vrcp.pop %v1013
  %vm1071 = vcmp.ne.f32.partialorder %v615, 0.0
  %vm1072 = vcmp.ne.f32.partialorder %v616, 0.0
  %vm1073 = vcmp.ne.f32.partialorder %v617, 0.0
  %vm1074 = vcmp.ne.f32.partialorder %v618, 0.0
  %vm1075 = vcmp.ne.f32.partialorder %v619, 0.0
  %vm1076 = vcmp.ne.f32.partialorder %v620, 0.0
  %vm1077 = vcmp.ne.f32.partialorder %v621, 0.0
  %vm1078 = vcmp.ne.f32.partialorder %v622, 0.0
  %vm1079 = vcmp.ne.f32.partialorder %v623, 0.0
  %vm1080 = vcmp.ne.f32.partialorder %v624, 0.0
  %vm1081 = vcmp.ne.f32.partialorder %v625, 0.0
  %vm1082 = vcmp.ne.f32.partialorder %v626, 0.0
  %vm1083 = vcmp.ne.f32.partialorder %v627, 0.0
  %vm1084 = vcmp.ne.f32.partialorder %v628, 0.0
  %vm1085 = vcmp.ne.f32.partialorder %v629, 0.0
  %vm1086 = vcmp.ne.f32.partialorder %v630, 0.0
  %vm1087 = vcmp.ne.f32.partialorder %v631, 0.0
  %vm1088 = vcmp.ne.f32.partialorder %v632, 0.0
  %vm1089 = vcmp.ne.f32.partialorder %v633, 0.0
  %vm1090 = vcmp.ne.f32.partialorder %v634, 0.0
  %vm1091 = vcmp.ne.f32.partialorder %v635, 0.0
  %vm1092 = vcmp.ne.f32.partialorder %v636, 0.0
  %vm1093 = vcmp.ne.f32.partialorder %v637, 0.0
  %vm1094 = vcmp.ne.f32.partialorder %v638, 0.0
  %vm1095 = vcmp.ne.f32.partialorder %v639, 0.0
  %vm1096 = vcmp.ne.f32.partialorder %v640, 0.0
  %vm1097 = vcmp.ne.f32.partialorder %v641, 0.0
  %vm1098 = vcmp.ne.f32.partialorder %v642, 0.0
  %vm1099 = vcmp.ne.f32.partialorder %v643, 0.0
  %vm1100 = vcmp.ne.f32.partialorder %v644, 0.0
  %vm1101 = vcmp.ne.f32.partialorder %v645, 0.0
  %vm1102 = vcmp.ne.f32.partialorder %v646, 0.0
  %vm1103 = vcmp.ne.f32.partialorder %v647, 0.0
  %vm1104 = vcmp.ne.f32.partialorder %v648, 0.0
  %vm1105 = vcmp.ne.f32.partialorder %v649, 0.0
  %vm1106 = vcmp.ne.f32.partialorder %v650, 0.0
  %vm1107 = vcmp.ne.f32.partialorder %v651, 0.0
  %vm1108 = vcmp.ne.f32.partialorder %v652, 0.0
  %vm1109 = vcmp.ne.f32.partialorder %v653, 0.0
  %vm1110 = vcmp.ne.f32.partialorder %v654, 0.0
  %vm1111 = vcmp.ne.f32.partialorder %v655, 0.0
  %vm1112 = vcmp.ne.f32.partialorder %v656, 0.0
  %vm1113 = vcmp.ne.f32.partialorder %v657, 0.0
  %vm1114 = vcmp.ne.f32.partialorder %v658, 0.0
  %vm1115 = vcmp.ne.f32.partialorder %v659, 0.0
  %vm1116 = vcmp.ne.f32.partialorder %v660, 0.0
  %vm1117 = vcmp.ne.f32.partialorder %v661, 0.0
  %vm1118 = vcmp.ne.f32.partialorder %v662, 0.0
  %vm1119 = vcmp.ne.f32.partialorder %v663, 0.0
  %vm1120 = vcmp.ne.f32.partialorder %v664, 0.0
  %vm1121 = vcmp.ne.f32.partialorder %v665, 0.0
  %vm1122 = vcmp.ne.f32.partialorder %v666, 0.0
  %vm1123 = vcmp.ne.f32.partialorder %v667, 0.0
  %vm1124 = vcmp.ne.f32.partialorder %v668, 0.0
  %vm1125 = vcmp.ne.f32.partialorder %v669, 0.0
  %vm1126 = vcmp.ne.f32.partialorder %v670, 0.0
  %vm1127 = vcmp.ne.f32.partialorder %v671, 0.0
  %v1128 = vmul.f32 %v332, %v672
  %v1129 = vmul.f32 %v337, %v673
  %v1130 = vmul.f32 %v342, %v674
  %v1131 = vmul.f32 %v347, %v675
  %v1132 = vmul.f32 %v352, %v676
  %v1133 = vmul.f32 %v357, %v677
  %v1134 = vmul.f32 %v362, %v678
  %v1135 = vmul.f32 %v367, %v679
  %v1136 = vmul.f32 %v372, %v680
  %v1137 = vmul.f32 %v377, %v681
  %v1138 = vmul.f32 %v382, %v682
  %v1139 = vmul.f32 %v387, %v683
  %v1140 = vmul.f32 %v392, %v684
  %v1141 = vmul.f32 %v397, %v685
  %v1142 = vmul.f32 %v402, %v686
  %v1143 = vmul.f32 %v407, %v687
  %v1144 = vmul.f32 %v412, %v688
  %v1145 = vmul.f32 %v417, %v689
  %v1146 = vmul.f32 %v422, %v690
  %v1147 = vmul.f32 %v427, %v691
  %v1148 = vmul.f32 %v432, %v692
  %v1149 = vmul.f32 %v437, %v693
  %v1150 = vmul.f32 %v442, %v694
  %v1151 = vmul.f32 %v447, %v695
  %v1152 = vmul.f32 %v452, %v696
  %v1153 = vmul.f32 %v457, %v697
  %v1154 = vmul.f32 %v462, %v698
  %v1155 = vmul.f32 %v467, %v699
  %v1156 = vmul.f32 %v472, %v700
  %v1157 = vmul.f32 %v477, %v701
  %v1158 = vmul.f32 %v482, %v702
  %v1159 = vmul.f32 %v487, %v703
  %v1160 = vmul.f32 %v492, %v704
  %v1161 = vmul.f32 %v497, %v705
  %v1162 = vmul.f32 %v502, %v706
  %v1163 = vmul.f32 %v507, %v707
  %v1164 = vmul.f32 %v512, %v708
  %v1165 = vmul.f32 %v517, %v709
  %v1166 = vmul.f32 %v522, %v710
  %v1167 = vmul.f32 %v527, %v711
  %v1168 = vmul.f32 %v532, %v712
  %v1169 = vmul.f32 %v537, %v713
  %v1170 = vmul.f32 %v542, %v714
  %v1171 = vmul.f32 %v547, %v715
  %v1172 = vmul.f32 %v552, %v716
  %v1173 = vmul.f32 %v557, %v717
  %v1174 = vmul.f32 %v562, %v718
  %v1175 = vmul.f32 %v567, %v719
  %v1176 = vmul.f32 %v572, %v720
  %v1177 = vmul.f32 %v577, %v721
  %v1178 = vmul.f32 %v582, %v722
  %v1179 = vmul.f32 %v587, %v723
  %v1180 = vmul.f32 %v592, %v724
  %v1181 = vmul.f32 %v597, %v725
  %v1182 = vmul.f32 %v602, %v726
  %v1183 = vmul.f32 %v607, %v727
  %v1184 = vmul.f32 %v612, %v728
  %v1185 = vadd.f32 %v1128, %v729
  %v1186 = vadd.f32 %v1129, %v730
  %v1187 = vadd.f32 %v1130, %v731
  %v1188 = vadd.f32 %v1131, %v732
  %v1189 = vadd.f32 %v1132, %v733
  %v1190 = vadd.f32 %v1133, %v734
  %v1191 = vadd.f32 %v1134, %v735
  %v1192 = vadd.f32 %v1135, %v736
  %v1193 = vadd.f32 %v1136, %v737
  %v1194 = vadd.f32 %v1137, %v738
  %v1195 = vadd.f32 %v1138, %v739
  %v1196 = vadd.f32 %v1139, %v740
  %v1197 = vadd.f32 %v1140, %v741
  %v1198 = vadd.f32 %v1141, %v742
  %v1199 = vadd.f32 %v1142, %v743
  %v1200 = vadd.f32 %v1143, %v744
  %v1201 = vadd.f32 %v1144, %v745
  %v1202 = vadd.f32 %v1145, %v746
  %v1203 = vadd.f32 %v1146, %v747
  %v1204 = vadd.f32 %v1147, %v748
  %v1205 = vadd.f32 %v1148, %v749
  %v1206 = vadd.f32 %v1149, %v750
  %v1207 = vadd.f32 %v1150, %v751
  %v1208 = vadd.f32 %v1151, %v752
  %v1209 = vadd.f32 %v1152, %v753
  %v1210 = vadd.f32 %v1153, %v754
  %v1211 = vadd.f32 %v1154, %v755
  %v1212 = vadd.f32 %v1155, %v756
  %v1213 = vadd.f32 %v1156, %v757
  %v1214 = vadd.f32 %v1157, %v758
  %v1215 = vadd.f32 %v1158, %v759
  %v1216 = vadd.f32 %v1159, %v760
  %v1217 = vadd.f32 %v1160, %v761
  %v1218 = vadd.f32 %v1161, %v762
  %v1219 = vadd.f32 %v1162, %v763
  %v1220 = vadd.f32 %v1163, %v764
  %v1221 = vadd.f32 %v1164, %v765
  %v1222 = vadd.f32 %v1165, %v766
  %v1223 = vadd.f32 %v1166, %v767
  %v1224 = vadd.f32 %v1167, %v768
  %v1225 = vadd.f32 %v1168, %v769
  %v1226 = vadd.f32 %v1169, %v770
  %v1227 = vadd.f32 %v1170, %v771
  %v1228 = vadd.f32 %v1171, %v772
  %v1229 = vadd.f32 %v1172, %v773
  %v1230 = vadd.f32 %v1173, %v774
  %v1231 = vadd.f32 %v1174, %v775
  %v1232 = vadd.f32 %v1175, %v776
  %v1233 = vadd.f32 %v1176, %v777
  %v1234 = vadd.f32 %v1177, %v778
  %v1235 = vadd.f32 %v1178, %v779
  %v1236 = vadd.f32 %v1179, %v780
  %v1237 = vadd.f32 %v1180, %v781
  %v1238 = vadd.f32 %v1181, %v782
  %v1239 = vadd.f32 %v1182, %v783
  %v1240 = vadd.f32 %v1183, %v784
  %v1241 = vadd.f32 %v1184, %v785
  %v1242 = vsel %vm1071, %v1185, %v1014
  %v1243 = vsel %vm1072, %v1186, %v1015
  %v1244 = vsel %vm1073, %v1187, %v1016
  %v1245 = vsel %vm1074, %v1188, %v1017
  %v1246 = vsel %vm1075, %v1189, %v1018
  %v1247 = vsel %vm1076, %v1190, %v1019
  %v1248 = vsel %vm1077, %v1191, %v1020
  %v1249 = vsel %vm1078, %v1192, %v1021
  %v1250 = vsel %vm1079, %v1193, %v1022
  %v1251 = vsel %vm1080, %v1194, %v1023
  %v1252 = vsel %vm1081, %v1195, %v1024
  %v1253 = vsel %vm1082, %v1196, %v1025
  %v1254 = vsel %vm1083, %v1197, %v1026
  %v1255 = vsel %vm1084, %v1198, %v1027
  %v1256 = vsel %vm1085, %v1199, %v1028
  %v1257 = vsel %vm1086, %v1200, %v1029
  %v1258 = vsel %vm1087, %v1201, %v1030
  %v1259 = vsel %vm1088, %v1202, %v1031
  %v1260 = vsel %vm1089, %v1203, %v1032
  %v1261 = vsel %vm1090, %v1204, %v1033
  %v1262 = vsel %vm1091, %v1205, %v1034
  %v1263 = vsel %vm1092, %v1206, %v1035
  %v1264 = vsel %vm1093, %v1207, %v1036
  %v1265 = vsel %vm1094, %v1208, %v1037
  %v1266 = vsel %vm1095, %v1209, %v1038
  %v1267 = vsel %vm1096, %v1210, %v1039
  %v1268 = vsel %vm1097, %v1211, %v1040
  %v1269 = vsel %vm1098, %v1212, %v1041
  %v1270 = vsel %vm1099, %v1213, %v1042
  %v1271 = vsel %vm1100, %v1214, %v1043
  %v1272 = vsel %vm1101, %v1215, %v1044
  %v1273 = vsel %vm1102, %v1216, %v1045
  %v1274 = vsel %vm1103, %v1217, %v1046
  %v1275 = vsel %vm1104, %v1218, %v1047
  %v1276 = vsel %vm1105, %v1219, %v1048
  %v1277 = vsel %vm1106, %v1220, %v1049
  %v1278 = vsel %vm1107, %v1221, %v1050
  %v1279 = vsel %vm1108, %v1222, %v1051
  %v1280 = vsel %vm1109, %v1223, %v1052
  %v1281 = vsel %vm1110, %v1224, %v1053
  %v1282 = vsel %vm1111, %v1225, %v1054
  %v1283 = vsel %vm1112, %v1226, %v1055
  %v1284 = vsel %vm1113, %v1227, %v1056
  %v1285 = vsel %vm1114, %v1228, %v1057
  %v1286 = vsel %vm1115, %v1229, %v1058
  %v1287 = vsel %vm1116, %v1230, %v1059
  %v1288 = vsel %vm1117, %v1231, %v1060
  %v1289 = vsel %vm1118, %v1232, %v1061
  %v1290 = vsel %vm1119, %v1233, %v1062
  %v1291 = vsel %vm1120, %v1234, %v1063
  %v1292 = vsel %vm1121, %v1235, %v1064
  %v1293 = vsel %vm1122, %v1236, %v1065
  %v1294 = vsel %vm1123, %v1237, %v1066
  %v1295 = vsel %vm1124, %v1238, %v1067
  %v1296 = vsel %vm1125, %v1239, %v1068
  %v1297 = vsel %vm1126, %v1240, %v1069
  %v1298 = vsel %vm1127, %v1241, %v1070
  %1299 = vst [vmem:[%s6] sm:$0xff] %v1242
  %1300 = vst [vmem:[%s6 + $0x8] sm:$0xff] %v1243
  %1301 = vst [vmem:[%s6 + $0x10] sm:$0xff] %v1244
  %1302 = vst [vmem:[%s6 + $0x18] sm:$0xff] %v1245
  %1303 = vst [vmem:[%s6 + $0x20] sm:$0xff] %v1246
  %1304 = vst [vmem:[%s6 + $0x28] sm:$0xff] %v1247
  %1305 = vst [vmem:[%s6 + $0x30] sm:$0xff] %v1248
  %1306 = vst [vmem:[%s6 + $0x38] sm:$0xff] %v1249
  %1307 = vst [vmem:[%s6 + $0x40] sm:$0xff] %v1250
  %1308 = vst [vmem:[%s6 + $0x48] sm:$0xff] %v1251
  %1309 = vst [vmem:[%s6 + $0x50] sm:$0xff] %v1252
  %1310 = vst [vmem:[%s6 + $0x58] sm:$0xff] %v1253
  %1311 = vst [vmem:[%s6 + $0x60] sm:$0xff] %v1254
  %1312 = vst [vmem:[%s6 + $0x68] sm:$0xff] %v1255
  %1313 = vst [vmem:[%s6 + $0x70] sm:$0xff] %v1256
  %1314 = vst [vmem:[%s6 + $0x78] sm:$0xff] %v1257
  %1315 = vst [vmem:[%s6 + $0x80] sm:$0xff] %v1258
  %1316 = vst [vmem:[%s6 + $0x88] sm:$0xff] %v1259
  %1317 = vst [vmem:[%s6 + $0x90] sm:$0xff] %v1260
  %1318 = vst [vmem:[%s6 + $0x98] sm:$0xff] %v1261
  %1319 = vst [vmem:[%s6 + $0xa0] sm:$0xff] %v1262
  %1320 = vst [vmem:[%s6 + $0xa8] sm:$0xff] %v1263
  %1321 = vst [vmem:[%s6 + $0xb0] sm:$0xff] %v1264
  %1322 = vst [vmem:[%s6 + $0xb8] sm:$0xff] %v1265
  %1323 = vst [vmem:[%s6 + $0xc0] sm:$0xff] %v1266
  %1324 = vst [vmem:[%s6 + $0xc8] sm:$0xff] %v1267
  %1325 = vst [vmem:[%s6 + $0xd0] sm:$0xff] %v1268
  %1326 = vst [vmem:[%s6 + $0xd8] sm:$0xff] %v1269
  %1327 = vst [vmem:[%s6 + $0xe0] sm:$0xff] %v1270
  %1328 = vst [vmem:[%s6 + $0xe8] sm:$0xff] %v1271
  %1329 = vst [vmem:[%s6 + $0xf0] sm:$0xff] %v1272
  %1330 = vst [vmem:[%s6 + $0xf8] sm:$0xff] %v1273
  %1331 = vst [vmem:[%s6 + $0x100] sm:$0xff] %v1274
  %1332 = vst [vmem:[%s6 + $0x108] sm:$0xff] %v1275
  %1333 = vst [vmem:[%s6 + $0x110] sm:$0xff] %v1276
  %1334 = vst [vmem:[%s6 + $0x118] sm:$0xff] %v1277
  %1335 = vst [vmem:[%s6 + $0x120] sm:$0xff] %v1278
  %1336 = vst [vmem:[%s6 + $0x128] sm:$0xff] %v1279
  %1337 = vst [vmem:[%s6 + $0x130] sm:$0xff] %v1280
  %1338 = vst [vmem:[%s6 + $0x138] sm:$0xff] %v1281
  %1339 = vst [vmem:[%s6 + $0x140] sm:$0xff] %v1282
  %1340 = vst [vmem:[%s6 + $0x148] sm:$0xff] %v1283
  %1341 = vst [vmem:[%s6 + $0x150] sm:$0xff] %v1284
  %1342 = vst [vmem:[%s6 + $0x158] sm:$0xff] %v1285
  %1343 = vst [vmem:[%s6 + $0x160] sm:$0xff] %v1286
  %1344 = vst [vmem:[%s6 + $0x168] sm:$0xff] %v1287
  %1345 = vst [vmem:[%s6 + $0x170] sm:$0xff] %v1288
  %1346 = vst [vmem:[%s6 + $0x178] sm:$0xff] %v1289
  %1347 = vst [vmem:[%s6 + $0x180] sm:$0xff] %v1290
  %1348 = vst [vmem:[%s6 + $0x188] sm:$0xff] %v1291
  %1349 = vst [vmem:[%s6 + $0x190] sm:$0xff] %v1292
  %1350 = vst [vmem:[%s6 + $0x198] sm:$0xff] %v1293
  %1351 = vst [vmem:[%s6 + $0x1a0] sm:$0xff] %v1294
  %1352 = vst [vmem:[%s6 + $0x1a8] sm:$0xff] %v1295
  %1353 = vst [vmem:[%s6 + $0x1b0] sm:$0xff] %v1296
  %1354 = vst [vmem:[%s6 + $0x1b8] sm:$0xff] %v1297
  %1355 = vst [vmem:[%s6 + $0x1c0] sm:$0xff] %v1298
  // Predicated region
  $region26: #{forward.3} parent=0 // pred_check
    _
  $region27: #{forward.3} parent=0 // pred_check_branch
    %1357 = sbr.rel (0) target = $region29
  $region28: #{forward.3} parent=0 // pred_region
    _
  $region29: #{forward.3} parent=0 // pred_fallthru
    _
  // Predicated region
  $region30: #{forward.3} parent=0 // pred_check
    _
  $region31: #{forward.3} parent=0 // pred_check_branch
    %1359 = sbr.rel (0) target = $region33
  $region32: #{forward.3} parent=0 // pred_region
    _
  $region33: #{forward.3} parent=0 // pred_fallthru
    _

// kernel: forward.4
$region0: #{forward.4}
  #allocation0 [shape = 'u32[]', space=smem, size = 0x4, offset = 0x4, fixed_abs, tag = 'smem constant byte address 0x4 - core index']
  #allocation1 [shape = 'u32[144,128]{1,0:T(1,128)}', space=vmem, size = 0x12000, scoped, tag = 'internal scratch']
  %s0 = inlined_call_operand.vmem [shape: f32[72,256], index: 0, kind: input, shape index: {}]
  %s1 = inlined_call_operand.vmem [shape: f32[256,128], index: 1, kind: input, shape index: {}]
  %s2 = inlined_call_operand.vmem [shape: f32[1,128], index: 2, kind: input, shape index: {}]
  %s3 = inlined_call_operand.vmem [shape: f32[72,128], index: 3, kind: input, shape index: {}]
  %s4 = inlined_call_operand.vmem [shape: f32[72,128], index: 4, kind: input, shape index: {}]
  %s5 = inlined_call_operand.vmem [shape: f32[72,128], index: 5, kind: input, shape index: {}]
  %s6 = inlined_call_operand.vmem [shape: f32[72,128], index: 6, kind: output, shape index: {}]
  %s7 = sld [smem:[#allocation0]]
  $region34: #{forward.4} parent=0
    _
  %s9 = ssub.s32 1, %s7
  %s10 = scalar_select 0, %s9, %s7
  // Predicated region
  $region2: #{forward.4} parent=0 // pred_check
    _
  $region3: #{forward.4} parent=0 // pred_check_branch
    %12 = sbr.rel (0) target = $region5
  $region4: #{forward.4} parent=0 // pred_region
    _
  $region5: #{forward.4} parent=0 // pred_fallthru
    _
  // Predicated region
  $region6: #{forward.4} parent=0 // pred_check
    _
  $region7: #{forward.4} parent=0 // pred_check_branch
    %14 = sbr.rel (0) target = $region9
  $region8: #{forward.4} parent=0 // pred_region
    _
  $region9: #{forward.4} parent=0 // pred_fallthru
    _
  // Predicated region
  $region10: #{forward.4} parent=0 // pred_check
    _
  $region11: #{forward.4} parent=0 // pred_check_branch
    %16 = sbr.rel (0) target = $region13
  $region12: #{forward.4} parent=0 // pred_region
    _
  $region13: #{forward.4} parent=0 // pred_fallthru
    _
  // Predicated region
  $region14: #{forward.4} parent=0 // pred_check
    _
  $region15: #{forward.4} parent=0 // pred_check_branch
    %18 = sbr.rel (0) target = $region17
  $region16: #{forward.4} parent=0 // pred_region
    _
  $region17: #{forward.4} parent=0 // pred_fallthru
    _
  // Predicated region
  $region18: #{forward.4} parent=0 // pred_check
    _
  $region19: #{forward.4} parent=0 // pred_check_branch
    %20 = sbr.rel (0) target = $region21
  $region20: #{forward.4} parent=0 // pred_region
    _
  $region21: #{forward.4} parent=0 // pred_fallthru
    _
  // Predicated region
  $region22: #{forward.4} parent=0 // pred_check
    _
  $region23: #{forward.4} parent=0 // pred_check_branch
    %22 = sbr.rel (0) target = $region25
  $region24: #{forward.4} parent=0 // pred_region
    _
  $region25: #{forward.4} parent=0 // pred_fallthru
    _
  %v23 = vld [vmem:[%s0] sm:$0xff]
  %v24 = vld [vmem:[%s0 + $0x8] sm:$0xff]
  %v25 = vld [vmem:[%s0 + $0x10] sm:$0xff]
  %v26 = vld [vmem:[%s0 + $0x18] sm:$0xff]
  %v27 = vld [vmem:[%s0 + $0x20] sm:$0xff]
  %v28 = vld [vmem:[%s0 + $0x28] sm:$0xff]
  %v29 = vld [vmem:[%s0 + $0x30] sm:$0xff]
  %v30 = vld [vmem:[%s0 + $0x38] sm:$0xff]
  %v31 = vld [vmem:[%s0 + $0x40] sm:$0xff]
  %v32 = vld [vmem:[%s0 + $0x48] sm:$0xff]
  %v33 = vld [vmem:[%s0 + $0x50] sm:$0xff]
  %v34 = vld [vmem:[%s0 + $0x58] sm:$0xff]
  %v35 = vld [vmem:[%s0 + $0x60] sm:$0xff]
  %v36 = vld [vmem:[%s0 + $0x68] sm:$0xff]
  %v37 = vld [vmem:[%s0 + $0x70] sm:$0xff]
  %v38 = vld [vmem:[%s0 + $0x78] sm:$0xff]
  %v39 = vld [vmem:[%s0 + $0x80] sm:$0xff]
  %v40 = vld [vmem:[%s0 + $0x88] sm:$0xff]
  %v41 = vld [vmem:[%s1] sm:$0xff]
  %v42 = vld [vmem:[%s1 + $0x8] sm:$0xff]
  %v43 = vld [vmem:[%s1 + $0x10] sm:$0xff]
  %v44 = vld [vmem:[%s1 + $0x18] sm:$0xff]
  %v45 = vld [vmem:[%s1 + $0x20] sm:$0xff]
  %v46 = vld [vmem:[%s1 + $0x28] sm:$0xff]
  %v47 = vld [vmem:[%s1 + $0x30] sm:$0xff]
  %v48 = vld [vmem:[%s1 + $0x38] sm:$0xff]
  %v49 = vld [vmem:[%s1 + $0x40] sm:$0xff]
  %v50 = vld [vmem:[%s1 + $0x48] sm:$0xff]
  %v51 = vld [vmem:[%s1 + $0x50] sm:$0xff]
  %v52 = vld [vmem:[%s1 + $0x58] sm:$0xff]
  %v53 = vld [vmem:[%s1 + $0x60] sm:$0xff]
  %v54 = vld [vmem:[%s1 + $0x68] sm:$0xff]
  %v55 = vld [vmem:[%s1 + $0x70] sm:$0xff]
  %v56 = vld [vmem:[%s1 + $0x78] sm:$0xff]
  %v57 = vld [vmem:[%s1 + $0x80] sm:$0xff]
  %v58 = vld [vmem:[%s1 + $0x88] sm:$0xff]
  %v59 = vld [vmem:[%s1 + $0x90] sm:$0xff]
  %v60 = vld [vmem:[%s1 + $0x98] sm:$0xff]
  %v61 = vld [vmem:[%s1 + $0xa0] sm:$0xff]
  %v62 = vld [vmem:[%s1 + $0xa8] sm:$0xff]
  %v63 = vld [vmem:[%s1 + $0xb0] sm:$0xff]
  %v64 = vld [vmem:[%s1 + $0xb8] sm:$0xff]
  %v65 = vld [vmem:[%s1 + $0xc0] sm:$0xff]
  %v66 = vld [vmem:[%s1 + $0xc8] sm:$0xff]
  %v67 = vld [vmem:[%s1 + $0xd0] sm:$0xff]
  %v68 = vld [vmem:[%s1 + $0xd8] sm:$0xff]
  %v69 = vld [vmem:[%s1 + $0xe0] sm:$0xff]
  %v70 = vld [vmem:[%s1 + $0xe8] sm:$0xff]
  %v71 = vld [vmem:[%s1 + $0xf0] sm:$0xff]
  %v72 = vld [vmem:[%s1 + $0xf8] sm:$0xff]
  %v73 = vld [vmem:[%s2] sm:$0x1]
  %v75 = vlaneseq
  %v76 = vshrl.u32 %v75, 7
  %v77 = vsub.s32 0, %v76
  %v78 = vrot.slane %v73, %v77
  %80 = vmatprep.subr.mxu0 0.0
  %81 = vmatpush1.msra.mxu0 %v56
  %82 = vmatprep.subr.mxu0 0.0
  %83 = vmatpush1.msra.mxu0 %v55
  %84 = vmatprep.subr.mxu0 0.0
  %85 = vmatpush1.msra.mxu0 %v54
  %86 = vmatprep.subr.mxu0 0.0
  %87 = vmatpush1.msra.mxu0 %v53
  %88 = vmatprep.subr.mxu0 0.0
  %89 = vmatpush1.msra.mxu0 %v52
  %90 = vmatprep.subr.mxu0 0.0
  %91 = vmatpush1.msra.mxu0 %v51
  %92 = vmatprep.subr.mxu0 0.0
  %93 = vmatpush1.msra.mxu0 %v50
  %94 = vmatprep.subr.mxu0 0.0
  %95 = vmatpush1.msra.mxu0 %v49
  %96 = vmatprep.subr.mxu0 0.0
  %97 = vmatpush1.msra.mxu0 %v48
  %98 = vmatprep.subr.mxu0 0.0
  %99 = vmatpush1.msra.mxu0 %v47
  %100 = vmatprep.subr.mxu0 0.0
  %101 = vmatpush1.msra.mxu0 %v46
  %102 = vmatprep.subr.mxu0 0.0
  %103 = vmatpush1.msra.mxu0 %v45
  %104 = vmatprep.subr.mxu0 0.0
  %105 = vmatpush1.msra.mxu0 %v44
  %106 = vmatprep.subr.mxu0 0.0
  %107 = vmatpush1.msra.mxu0 %v43
  %108 = vmatprep.subr.mxu0 0.0
  %109 = vmatpush1.msra.mxu0 %v42
  %110 = vmatprep.subr.mxu0 0.0
  %111 = vmatpush1.msra.mxu0 %v41
  %112 = vmatprep.subr.mxu0 0.0
  %113 = vmatpush2.msra.mxu0 %v72
  %114 = vmatprep.subr.mxu0 0.0
  %115 = vmatpush2.msra.mxu0 %v71
  %116 = vmatprep.subr.mxu0 0.0
  %117 = vmatpush2.msra.mxu0 %v70
  %118 = vmatprep.subr.mxu0 0.0
  %119 = vmatpush2.msra.mxu0 %v69
  %120 = vmatprep.subr.mxu0 0.0
  %121 = vmatpush2.msra.mxu0 %v68
  %122 = vmatprep.subr.mxu0 0.0
  %123 = vmatpush2.msra.mxu0 %v67
  %124 = vmatprep.subr.mxu0 0.0
  %125 = vmatpush2.msra.mxu0 %v66
  %126 = vmatprep.subr.mxu0 0.0
  %127 = vmatpush2.msra.mxu0 %v65
  %128 = vmatprep.subr.mxu0 0.0
  %129 = vmatpush2.msra.mxu0 %v64
  %130 = vmatprep.subr.mxu0 0.0
  %131 = vmatpush2.msra.mxu0 %v63
  %132 = vmatprep.subr.mxu0 0.0
  %133 = vmatpush2.msra.mxu0 %v62
  %134 = vmatprep.subr.mxu0 0.0
  %135 = vmatpush2.msra.mxu0 %v61
  %136 = vmatprep.subr.mxu0 0.0
  %137 = vmatpush2.msra.mxu0 %v60
  %138 = vmatprep.subr.mxu0 0.0
  %139 = vmatpush2.msra.mxu0 %v59
  %140 = vmatprep.subr.mxu0 0.0
  %141 = vmatpush2.msra.mxu0 %v58
  %142 = vmatprep.subr.mxu0 0.0
  %143 = vmatpush2.msra.mxu0 %v57
  %144 = vmatprep.mubr.f32.mxu0 %v24
  %145 = vmatmul.mubr.f32.gmra.mxu0 %v23
  %v146 = vpop.f32.mrf.mxu0
  %v147 = vadd.f32 %v78, %v146
  %v148 = vpop.f32.mrf.mxu0
  %149 = vmatprep.mubr.f32.mxu0 %v26
  %150 = vmatmul.mubr.f32.gmra.mxu0 %v25
  %v151 = vpop.f32.mrf.mxu0
  %v152 = vadd.f32 %v78, %v151
  %v153 = vpop.f32.mrf.mxu0
  %154 = vmatprep.mubr.f32.mxu0 %v28
  %155 = vmatmul.mubr.f32.gmra.mxu0 %v27
  %v156 = vpop.f32.mrf.mxu0
  %v157 = vadd.f32 %v78, %v156
  %v158 = vpop.f32.mrf.mxu0
  %159 = vmatprep.mubr.f32.mxu0 %v30
  %160 = vmatmul.mubr.f32.gmra.mxu0 %v29
  %v161 = vpop.f32.mrf.mxu0
  %v162 = vadd.f32 %v78, %v161
  %v163 = vpop.f32.mrf.mxu0
  %164 = vmatprep.mubr.f32.mxu0 %v32
  %165 = vmatmul.mubr.f32.gmra.mxu0 %v31
  %v166 = vpop.f32.mrf.mxu0
  %v167 = vadd.f32 %v78, %v166
  %v168 = vpop.f32.mrf.mxu0
  %169 = vmatprep.mubr.f32.mxu0 %v34
  %170 = vmatmul.mubr.f32.gmra.mxu0 %v33
  %v171 = vpop.f32.mrf.mxu0
  %v172 = vadd.f32 %v78, %v171
  %v173 = vpop.f32.mrf.mxu0
  %174 = vmatprep.mubr.f32.mxu0 %v36
  %175 = vmatmul.mubr.f32.gmra.mxu0 %v35
  %v176 = vpop.f32.mrf.mxu0
  %v177 = vadd.f32 %v78, %v176
  %v178 = vpop.f32.mrf.mxu0
  %179 = vmatprep.mubr.f32.mxu0 %v38
  %180 = vmatmul.mubr.f32.gmra.mxu0 %v37
  %v181 = vpop.f32.mrf.mxu0
  %v182 = vadd.f32 %v78, %v181
  %v183 = vpop.f32.mrf.mxu0
  %184 = vmatprep.mubr.f32.mxu0 %v40
  %185 = vmatmul.mubr.f32.gmra.mxu0 %v39
  %v186 = vpop.f32.mrf.mxu0
  %v187 = vadd.f32 %v78, %v186
  %v188 = vpop.f32.mrf.mxu0
  %189 = vdwg.mxu0
  %v190 = vld [vmem:[%s3] sm:$0xff]
  %v191 = vld [vmem:[%s3 + $0x8] sm:$0xff]
  %v192 = vld [vmem:[%s3 + $0x10] sm:$0xff]
  %v193 = vld [vmem:[%s3 + $0x18] sm:$0xff]
  %v194 = vld [vmem:[%s3 + $0x20] sm:$0xff]
  %v195 = vld [vmem:[%s3 + $0x28] sm:$0xff]
  %v196 = vld [vmem:[%s3 + $0x30] sm:$0xff]
  %v197 = vld [vmem:[%s3 + $0x38] sm:$0xff]
  %v198 = vld [vmem:[%s3 + $0x40] sm:$0xff]
  %v199 = vld [vmem:[%s4] sm:$0xff]
  %v200 = vld [vmem:[%s4 + $0x8] sm:$0xff]
  %v201 = vld [vmem:[%s4 + $0x10] sm:$0xff]
  %v202 = vld [vmem:[%s4 + $0x18] sm:$0xff]
  %v203 = vld [vmem:[%s4 + $0x20] sm:$0xff]
  %v204 = vld [vmem:[%s4 + $0x28] sm:$0xff]
  %v205 = vld [vmem:[%s4 + $0x30] sm:$0xff]
  %v206 = vld [vmem:[%s4 + $0x38] sm:$0xff]
  %v207 = vld [vmem:[%s4 + $0x40] sm:$0xff]
  %v208 = vld [vmem:[%s5] sm:$0xff]
  %v209 = vld [vmem:[%s5 + $0x8] sm:$0xff]
  %v210 = vld [vmem:[%s5 + $0x10] sm:$0xff]
  %v211 = vld [vmem:[%s5 + $0x18] sm:$0xff]
  %v212 = vld [vmem:[%s5 + $0x20] sm:$0xff]
  %v213 = vld [vmem:[%s5 + $0x28] sm:$0xff]
  %v214 = vld [vmem:[%s5 + $0x30] sm:$0xff]
  %v215 = vld [vmem:[%s5 + $0x38] sm:$0xff]
  %v216 = vld [vmem:[%s5 + $0x40] sm:$0xff]
  %v217 = vsub.f32 0.0, %v147
  %v218 = vsub.f32 0.0, %v152
  %v219 = vsub.f32 0.0, %v157
  %v220 = vsub.f32 0.0, %v162
  %v221 = vsub.f32 0.0, %v167
  %v222 = vsub.f32 0.0, %v172
  %v223 = vsub.f32 0.0, %v177
  %v224 = vsub.f32 0.0, %v182
  %v225 = vsub.f32 0.0, %v187
  %v226 = vmul.f32 %v217, 1.442695
  %v227 = vpow.pop %v226
  %v228 = vmul.f32 %v218, 1.442695
  %v229 = vpow.pop %v228
  %v230 = vmul.f32 %v219, 1.442695
  %v231 = vpow.pop %v230
  %v232 = vmul.f32 %v220, 1.442695
  %v233 = vpow.pop %v232
  %v234 = vmul.f32 %v221, 1.442695
  %v235 = vpow.pop %v234
  %v236 = vmul.f32 %v222, 1.442695
  %v237 = vpow.pop %v236
  %v238 = vmul.f32 %v223, 1.442695
  %v239 = vpow.pop %v238
  %v240 = vmul.f32 %v224, 1.442695
  %v241 = vpow.pop %v240
  %v242 = vmul.f32 %v225, 1.442695
  %v243 = vpow.pop %v242
  %v244 = vadd.f32 %v227, 1.0
  %v245 = vadd.f32 %v229, 1.0
  %v246 = vadd.f32 %v231, 1.0
  %v247 = vadd.f32 %v233, 1.0
  %v248 = vadd.f32 %v235, 1.0
  %v249 = vadd.f32 %v237, 1.0
  %v250 = vadd.f32 %v239, 1.0
  %v251 = vadd.f32 %v241, 1.0
  %v252 = vadd.f32 %v243, 1.0
  %v253 = vrcp.pop %v244
  %v254 = vrcp.pop %v245
  %v255 = vrcp.pop %v246
  %v256 = vrcp.pop %v247
  %v257 = vrcp.pop %v248
  %v258 = vrcp.pop %v249
  %v259 = vrcp.pop %v250
  %v260 = vrcp.pop %v251
  %v261 = vrcp.pop %v252
  %vm262 = vcmp.ne.f32.partialorder %v190, 0.0
  %vm263 = vcmp.ne.f32.partialorder %v191, 0.0
  %vm264 = vcmp.ne.f32.partialorder %v192, 0.0
  %vm265 = vcmp.ne.f32.partialorder %v193, 0.0
  %vm266 = vcmp.ne.f32.partialorder %v194, 0.0
  %vm267 = vcmp.ne.f32.partialorder %v195, 0.0
  %vm268 = vcmp.ne.f32.partialorder %v196, 0.0
  %vm269 = vcmp.ne.f32.partialorder %v197, 0.0
  %vm270 = vcmp.ne.f32.partialorder %v198, 0.0
  %v271 = vmul.f32 %v147, %v199
  %v272 = vmul.f32 %v152, %v200
  %v273 = vmul.f32 %v157, %v201
  %v274 = vmul.f32 %v162, %v202
  %v275 = vmul.f32 %v167, %v203
  %v276 = vmul.f32 %v172, %v204
  %v277 = vmul.f32 %v177, %v205
  %v278 = vmul.f32 %v182, %v206
  %v279 = vmul.f32 %v187, %v207
  %v280 = vadd.f32 %v271, %v208
  %v281 = vadd.f32 %v272, %v209
  %v282 = vadd.f32 %v273, %v210
  %v283 = vadd.f32 %v274, %v211
  %v284 = vadd.f32 %v275, %v212
  %v285 = vadd.f32 %v276, %v213
  %v286 = vadd.f32 %v277, %v214
  %v287 = vadd.f32 %v278, %v215
  %v288 = vadd.f32 %v279, %v216
  %v289 = vsel %vm262, %v280, %v253
  %v290 = vsel %vm263, %v281, %v254
  %v291 = vsel %vm264, %v282, %v255
  %v292 = vsel %vm265, %v283, %v256
  %v293 = vsel %vm266, %v284, %v257
  %v294 = vsel %vm267, %v285, %v258
  %v295 = vsel %vm268, %v286, %v259
  %v296 = vsel %vm269, %v287, %v260
  %v297 = vsel %vm270, %v288, %v261
  %298 = vst [vmem:[%s6] sm:$0xff] %v289
  %299 = vst [vmem:[%s6 + $0x8] sm:$0xff] %v290
  %300 = vst [vmem:[%s6 + $0x10] sm:$0xff] %v291
  %301 = vst [vmem:[%s6 + $0x18] sm:$0xff] %v292
  %302 = vst [vmem:[%s6 + $0x20] sm:$0xff] %v293
  %303 = vst [vmem:[%s6 + $0x28] sm:$0xff] %v294
  %304 = vst [vmem:[%s6 + $0x30] sm:$0xff] %v295
  %305 = vst [vmem:[%s6 + $0x38] sm:$0xff] %v296
  %306 = vst [vmem:[%s6 + $0x40] sm:$0xff] %v297
  // Predicated region
  $region26: #{forward.4} parent=0 // pred_check
    _
  $region27: #{forward.4} parent=0 // pred_check_branch
    %308 = sbr.rel (0) target = $region29
  $region28: #{forward.4} parent=0 // pred_region
    _
  $region29: #{forward.4} parent=0 // pred_fallthru
    _
  // Predicated region
  $region30: #{forward.4} parent=0 // pred_check
    _
  $region31: #{forward.4} parent=0 // pred_check_branch
    %310 = sbr.rel (0) target = $region33
  $region32: #{forward.4} parent=0 // pred_region
    _
  $region33: #{forward.4} parent=0 // pred_fallthru
    _

// kernel: forward.5
$region0: #{forward.5}
  #allocation0 [shape = 'u32[]', space=smem, size = 0x4, offset = 0x4, fixed_abs, tag = 'smem constant byte address 0x4 - core index']
  #allocation1 [shape = 'u32[144,128]{1,0:T(1,128)}', space=vmem, size = 0x12000, scoped, tag = 'internal scratch']
  %s0 = inlined_call_operand.vmem [shape: f32[8,1152], index: 0, kind: input, shape index: {}]
  %s1 = inlined_call_operand.vmem [shape: f32[1152,128], index: 1, kind: input, shape index: {}]
  %s2 = inlined_call_operand.vmem [shape: f32[1,128], index: 2, kind: input, shape index: {}]
  %s3 = inlined_call_operand.vmem [shape: f32[1,128], index: 3, kind: input, shape index: {}]
  %s4 = inlined_call_operand.vmem [shape: f32[1,128], index: 4, kind: input, shape index: {}]
  %s5 = inlined_call_operand.vmem [shape: f32[1,128], index: 5, kind: input, shape index: {}]
  %s6 = inlined_call_operand.vmem [shape: f32[128,128], index: 6, kind: input, shape index: {}]
  %s7 = inlined_call_operand.vmem [shape: f32[1,128], index: 7, kind: input, shape index: {}]
  %s8 = inlined_call_operand.vmem [shape: f32[8,128], index: 8, kind: output, shape index: {}]
  %s9 = sld [smem:[#allocation0]]
  $region42: #{forward.5} parent=0
    _
  %s11 = ssub.s32 1, %s9
  %s12 = scalar_select 0, %s11, %s9
  // Predicated region
  $region2: #{forward.5} parent=0 // pred_check
    _
  $region3: #{forward.5} parent=0 // pred_check_branch
    %14 = sbr.rel (0) target = $region5
  $region4: #{forward.5} parent=0 // pred_region
    _
  $region5: #{forward.5} parent=0 // pred_fallthru
    _
  // Predicated region
  $region6: #{forward.5} parent=0 // pred_check
    _
  $region7: #{forward.5} parent=0 // pred_check_branch
    %16 = sbr.rel (0) target = $region9
  $region8: #{forward.5} parent=0 // pred_region
    _
  $region9: #{forward.5} parent=0 // pred_fallthru
    _
  // Predicated region
  $region10: #{forward.5} parent=0 // pred_check
    _
  $region11: #{forward.5} parent=0 // pred_check_branch
    %18 = sbr.rel (0) target = $region13
  $region12: #{forward.5} parent=0 // pred_region
    _
  $region13: #{forward.5} parent=0 // pred_fallthru
    _
  // Predicated region
  $region14: #{forward.5} parent=0 // pred_check
    _
  $region15: #{forward.5} parent=0 // pred_check_branch
    %20 = sbr.rel (0) target = $region17
  $region16: #{forward.5} parent=0 // pred_region
    _
  $region17: #{forward.5} parent=0 // pred_fallthru
    _
  // Predicated region
  $region18: #{forward.5} parent=0 // pred_check
    _
  $region19: #{forward.5} parent=0 // pred_check_branch
    %22 = sbr.rel (0) target = $region21
  $region20: #{forward.5} parent=0 // pred_region
    _
  $region21: #{forward.5} parent=0 // pred_fallthru
    _
  // Predicated region
  $region22: #{forward.5} parent=0 // pred_check
    _
  $region23: #{forward.5} parent=0 // pred_check_branch
    %24 = sbr.rel (0) target = $region25
  $region24: #{forward.5} parent=0 // pred_region
    _
  $region25: #{forward.5} parent=0 // pred_fallthru
    _
  // Predicated region
  $region26: #{forward.5} parent=0 // pred_check
    _
  $region27: #{forward.5} parent=0 // pred_check_branch
    %26 = sbr.rel (0) target = $region29
  $region28: #{forward.5} parent=0 // pred_region
    _
  $region29: #{forward.5} parent=0 // pred_fallthru
    _
  // Predicated region
  $region30: #{forward.5} parent=0 // pred_check
    _
  $region31: #{forward.5} parent=0 // pred_check_branch
    %28 = sbr.rel (0) target = $region33
  $region32: #{forward.5} parent=0 // pred_region
    _
  $region33: #{forward.5} parent=0 // pred_fallthru
    _
  %v29 = vld [vmem:[%s0] sm:$0xff]
  %v30 = vld [vmem:[%s0 + $0x8] sm:$0xff]
  %v31 = vld [vmem:[%s0 + $0x10] sm:$0xff]
  %v32 = vld [vmem:[%s0 + $0x18] sm:$0xff]
  %v33 = vld [vmem:[%s0 + $0x20] sm:$0xff]
  %v34 = vld [vmem:[%s0 + $0x28] sm:$0xff]
  %v35 = vld [vmem:[%s0 + $0x30] sm:$0xff]
  %v36 = vld [vmem:[%s0 + $0x38] sm:$0xff]
  %v37 = vld [vmem:[%s0 + $0x40] sm:$0xff]
  %v38 = vld [vmem:[%s1] sm:$0xff]
  %v39 = vld [vmem:[%s1 + $0x8] sm:$0xff]
  %v40 = vld [vmem:[%s1 + $0x10] sm:$0xff]
  %v41 = vld [vmem:[%s1 + $0x18] sm:$0xff]
  %v42 = vld [vmem:[%s1 + $0x20] sm:$0xff]
  %v43 = vld [vmem:[%s1 + $0x28] sm:$0xff]
  %v44 = vld [vmem:[%s1 + $0x30] sm:$0xff]
  %v45 = vld [vmem:[%s1 + $0x38] sm:$0xff]
  %v46 = vld [vmem:[%s1 + $0x40] sm:$0xff]
  %v47 = vld [vmem:[%s1 + $0x48] sm:$0xff]
  %v48 = vld [vmem:[%s1 + $0x50] sm:$0xff]
  %v49 = vld [vmem:[%s1 + $0x58] sm:$0xff]
  %v50 = vld [vmem:[%s1 + $0x60] sm:$0xff]
  %v51 = vld [vmem:[%s1 + $0x68] sm:$0xff]
  %v52 = vld [vmem:[%s1 + $0x70] sm:$0xff]
  %v53 = vld [vmem:[%s1 + $0x78] sm:$0xff]
  %v54 = vld [vmem:[%s1 + $0x80] sm:$0xff]
  %v55 = vld [vmem:[%s1 + $0x88] sm:$0xff]
  %v56 = vld [vmem:[%s1 + $0x90] sm:$0xff]
  %v57 = vld [vmem:[%s1 + $0x98] sm:$0xff]
  %v58 = vld [vmem:[%s1 + $0xa0] sm:$0xff]
  %v59 = vld [vmem:[%s1 + $0xa8] sm:$0xff]
  %v60 = vld [vmem:[%s1 + $0xb0] sm:$0xff]
  %v61 = vld [vmem:[%s1 + $0xb8] sm:$0xff]
  %v62 = vld [vmem:[%s1 + $0xc0] sm:$0xff]
  %v63 = vld [vmem:[%s1 + $0xc8] sm:$0xff]
  %v64 = vld [vmem:[%s1 + $0xd0] sm:$0xff]
  %v65 = vld [vmem:[%s1 + $0xd8] sm:$0xff]
  %v66 = vld [vmem:[%s1 + $0xe0] sm:$0xff]
  %v67 = vld [vmem:[%s1 + $0xe8] sm:$0xff]
  %v68 = vld [vmem:[%s1 + $0xf0] sm:$0xff]
  %v69 = vld [vmem:[%s1 + $0xf8] sm:$0xff]
  %v70 = vld [vmem:[%s1 + $0x100] sm:$0xff]
  %v71 = vld [vmem:[%s1 + $0x108] sm:$0xff]
  %v72 = vld [vmem:[%s1 + $0x110] sm:$0xff]
  %v73 = vld [vmem:[%s1 + $0x118] sm:$0xff]
  %v74 = vld [vmem:[%s1 + $0x120] sm:$0xff]
  %v75 = vld [vmem:[%s1 + $0x128] sm:$0xff]
  %v76 = vld [vmem:[%s1 + $0x130] sm:$0xff]
  %v77 = vld [vmem:[%s1 + $0x138] sm:$0xff]
  %v78 = vld [vmem:[%s1 + $0x140] sm:$0xff]
  %v79 = vld [vmem:[%s1 + $0x148] sm:$0xff]
  %v80 = vld [vmem:[%s1 + $0x150] sm:$0xff]
  %v81 = vld [vmem:[%s1 + $0x158] sm:$0xff]
  %v82 = vld [vmem:[%s1 + $0x160] sm:$0xff]
  %v83 = vld [vmem:[%s1 + $0x168] sm:$0xff]
  %v84 = vld [vmem:[%s1 + $0x170] sm:$0xff]
  %v85 = vld [vmem:[%s1 + $0x178] sm:$0xff]
  %v86 = vld [vmem:[%s1 + $0x180] sm:$0xff]
  %v87 = vld [vmem:[%s1 + $0x188] sm:$0xff]
  %v88 = vld [vmem:[%s1 + $0x190] sm:$0xff]
  %v89 = vld [vmem:[%s1 + $0x198] sm:$0xff]
  %v90 = vld [vmem:[%s1 + $0x1a0] sm:$0xff]
  %v91 = vld [vmem:[%s1 + $0x1a8] sm:$0xff]
  %v92 = vld [vmem:[%s1 + $0x1b0] sm:$0xff]
  %v93 = vld [vmem:[%s1 + $0x1b8] sm:$0xff]
  %v94 = vld [vmem:[%s1 + $0x1c0] sm:$0xff]
  %v95 = vld [vmem:[%s1 + $0x1c8] sm:$0xff]
  %v96 = vld [vmem:[%s1 + $0x1d0] sm:$0xff]
  %v97 = vld [vmem:[%s1 + $0x1d8] sm:$0xff]
  %v98 = vld [vmem:[%s1 + $0x1e0] sm:$0xff]
  %v99 = vld [vmem:[%s1 + $0x1e8] sm:$0xff]
  %v100 = vld [vmem:[%s1 + $0x1f0] sm:$0xff]
  %v101 = vld [vmem:[%s1 + $0x1f8] sm:$0xff]
  %v102 = vld [vmem:[%s1 + $0x200] sm:$0xff]
  %v103 = vld [vmem:[%s1 + $0x208] sm:$0xff]
  %v104 = vld [vmem:[%s1 + $0x210] sm:$0xff]
  %v105 = vld [vmem:[%s1 + $0x218] sm:$0xff]
  %v106 = vld [vmem:[%s1 + $0x220] sm:$0xff]
  %v107 = vld [vmem:[%s1 + $0x228] sm:$0xff]
  %v108 = vld [vmem:[%s1 + $0x230] sm:$0xff]
  %v109 = vld [vmem:[%s1 + $0x238] sm:$0xff]
  %v110 = vld [vmem:[%s1 + $0x240] sm:$0xff]
  %v111 = vld [vmem:[%s1 + $0x248] sm:$0xff]
  %v112 = vld [vmem:[%s1 + $0x250] sm:$0xff]
  %v113 = vld [vmem:[%s1 + $0x258] sm:$0xff]
  %v114 = vld [vmem:[%s1 + $0x260] sm:$0xff]
  %v115 = vld [vmem:[%s1 + $0x268] sm:$0xff]
  %v116 = vld [vmem:[%s1 + $0x270] sm:$0xff]
  %v117 = vld [vmem:[%s1 + $0x278] sm:$0xff]
  %v118 = vld [vmem:[%s1 + $0x280] sm:$0xff]
  %v119 = vld [vmem:[%s1 + $0x288] sm:$0xff]
  %v120 = vld [vmem:[%s1 + $0x290] sm:$0xff]
  %v121 = vld [vmem:[%s1 + $0x298] sm:$0xff]
  %v122 = vld [vmem:[%s1 + $0x2a0] sm:$0xff]
  %v123 = vld [vmem:[%s1 + $0x2a8] sm:$0xff]
  %v124 = vld [vmem:[%s1 + $0x2b0] sm:$0xff]
  %v125 = vld [vmem:[%s1 + $0x2b8] sm:$0xff]
  %v126 = vld [vmem:[%s1 + $0x2c0] sm:$0xff]
  %v127 = vld [vmem:[%s1 + $0x2c8] sm:$0xff]
  %v128 = vld [vmem:[%s1 + $0x2d0] sm:$0xff]
  %v129 = vld [vmem:[%s1 + $0x2d8] sm:$0xff]
  %v130 = vld [vmem:[%s1 + $0x2e0] sm:$0xff]
  %v131 = vld [vmem:[%s1 + $0x2e8] sm:$0xff]
  %v132 = vld [vmem:[%s1 + $0x2f0] sm:$0xff]
  %v133 = vld [vmem:[%s1 + $0x2f8] sm:$0xff]
  %v134 = vld [vmem:[%s1 + $0x300] sm:$0xff]
  %v135 = vld [vmem:[%s1 + $0x308] sm:$0xff]
  %v136 = vld [vmem:[%s1 + $0x310] sm:$0xff]
  %v137 = vld [vmem:[%s1 + $0x318] sm:$0xff]
  %v138 = vld [vmem:[%s1 + $0x320] sm:$0xff]
  %v139 = vld [vmem:[%s1 + $0x328] sm:$0xff]
  %v140 = vld [vmem:[%s1 + $0x330] sm:$0xff]
  %v141 = vld [vmem:[%s1 + $0x338] sm:$0xff]
  %v142 = vld [vmem:[%s1 + $0x340] sm:$0xff]
  %v143 = vld [vmem:[%s1 + $0x348] sm:$0xff]
  %v144 = vld [vmem:[%s1 + $0x350] sm:$0xff]
  %v145 = vld [vmem:[%s1 + $0x358] sm:$0xff]
  %v146 = vld [vmem:[%s1 + $0x360] sm:$0xff]
  %v147 = vld [vmem:[%s1 + $0x368] sm:$0xff]
  %v148 = vld [vmem:[%s1 + $0x370] sm:$0xff]
  %v149 = vld [vmem:[%s1 + $0x378] sm:$0xff]
  %v150 = vld [vmem:[%s1 + $0x380] sm:$0xff]
  %v151 = vld [vmem:[%s1 + $0x388] sm:$0xff]
  %v152 = vld [vmem:[%s1 + $0x390] sm:$0xff]
  %v153 = vld [vmem:[%s1 + $0x398] sm:$0xff]
  %v154 = vld [vmem:[%s1 + $0x3a0] sm:$0xff]
  %v155 = vld [vmem:[%s1 + $0x3a8] sm:$0xff]
  %v156 = vld [vmem:[%s1 + $0x3b0] sm:$0xff]
  %v157 = vld [vmem:[%s1 + $0x3b8] sm:$0xff]
  %v158 = vld [vmem:[%s1 + $0x3c0] sm:$0xff]
  %v159 = vld [vmem:[%s1 + $0x3c8] sm:$0xff]
  %v160 = vld [vmem:[%s1 + $0x3d0] sm:$0xff]
  %v161 = vld [vmem:[%s1 + $0x3d8] sm:$0xff]
  %v162 = vld [vmem:[%s1 + $0x3e0] sm:$0xff]
  %v163 = vld [vmem:[%s1 + $0x3e8] sm:$0xff]
  %v164 = vld [vmem:[%s1 + $0x3f0] sm:$0xff]
  %v165 = vld [vmem:[%s1 + $0x3f8] sm:$0xff]
  %v166 = vld [vmem:[%s1 + $0x400] sm:$0xff]
  %v167 = vld [vmem:[%s1 + $0x408] sm:$0xff]
  %v168 = vld [vmem:[%s1 + $0x410] sm:$0xff]
  %v169 = vld [vmem:[%s1 + $0x418] sm:$0xff]
  %v170 = vld [vmem:[%s1 + $0x420] sm:$0xff]
  %v171 = vld [vmem:[%s1 + $0x428] sm:$0xff]
  %v172 = vld [vmem:[%s1 + $0x430] sm:$0xff]
  %v173 = vld [vmem:[%s1 + $0x438] sm:$0xff]
  %v174 = vld [vmem:[%s1 + $0x440] sm:$0xff]
  %v175 = vld [vmem:[%s1 + $0x448] sm:$0xff]
  %v176 = vld [vmem:[%s1 + $0x450] sm:$0xff]
  %v177 = vld [vmem:[%s1 + $0x458] sm:$0xff]
  %v178 = vld [vmem:[%s1 + $0x460] sm:$0xff]
  %v179 = vld [vmem:[%s1 + $0x468] sm:$0xff]
  %v180 = vld [vmem:[%s1 + $0x470] sm:$0xff]
  %v181 = vld [vmem:[%s1 + $0x478] sm:$0xff]
  %v182 = vld [vmem:[%s2] sm:$0x1]
  %v184 = vlaneseq
  %v185 = vshrl.u32 %v184, 7
  %v186 = vsub.s32 0, %v185
  %v187 = vrot.slane %v182, %v186
  %189 = vmatprep.subr.mxu0 0.0
  %190 = vmatpush1.msra.mxu0 %v53
  %191 = vmatprep.subr.mxu0 0.0
  %192 = vmatpush1.msra.mxu0 %v52
  %193 = vmatprep.subr.mxu0 0.0
  %194 = vmatpush1.msra.mxu0 %v51
  %195 = vmatprep.subr.mxu0 0.0
  %196 = vmatpush1.msra.mxu0 %v50
  %197 = vmatprep.subr.mxu0 0.0
  %198 = vmatpush1.msra.mxu0 %v49
  %199 = vmatprep.subr.mxu0 0.0
  %200 = vmatpush1.msra.mxu0 %v48
  %201 = vmatprep.subr.mxu0 0.0
  %202 = vmatpush1.msra.mxu0 %v47
  %203 = vmatprep.subr.mxu0 0.0
  %204 = vmatpush1.msra.mxu0 %v46
  %205 = vmatprep.subr.mxu0 0.0
  %206 = vmatpush1.msra.mxu0 %v45
  %207 = vmatprep.subr.mxu0 0.0
  %208 = vmatpush1.msra.mxu0 %v44
  %209 = vmatprep.subr.mxu0 0.0
  %210 = vmatpush1.msra.mxu0 %v43
  %211 = vmatprep.subr.mxu0 0.0
  %212 = vmatpush1.msra.mxu0 %v42
  %213 = vmatprep.subr.mxu0 0.0
  %214 = vmatpush1.msra.mxu0 %v41
  %215 = vmatprep.subr.mxu0 0.0
  %216 = vmatpush1.msra.mxu0 %v40
  %217 = vmatprep.subr.mxu0 0.0
  %218 = vmatpush1.msra.mxu0 %v39
  %219 = vmatprep.subr.mxu0 0.0
  %220 = vmatpush1.msra.mxu0 %v38
  %221 = vmatprep.subr.mxu0 0.0
  %222 = vmatpush2.msra.mxu0 %v69
  %223 = vmatprep.subr.mxu0 0.0
  %224 = vmatpush2.msra.mxu0 %v68
  %225 = vmatprep.subr.mxu0 0.0
  %226 = vmatpush2.msra.mxu0 %v67
  %227 = vmatprep.subr.mxu0 0.0
  %228 = vmatpush2.msra.mxu0 %v66
  %229 = vmatprep.subr.mxu0 0.0
  %230 = vmatpush2.msra.mxu0 %v65
  %231 = vmatprep.subr.mxu0 0.0
  %232 = vmatpush2.msra.mxu0 %v64
  %233 = vmatprep.subr.mxu0 0.0
  %234 = vmatpush2.msra.mxu0 %v63
  %235 = vmatprep.subr.mxu0 0.0
  %236 = vmatpush2.msra.mxu0 %v62
  %237 = vmatprep.subr.mxu0 0.0
  %238 = vmatpush2.msra.mxu0 %v61
  %239 = vmatprep.subr.mxu0 0.0
  %240 = vmatpush2.msra.mxu0 %v60
  %241 = vmatprep.subr.mxu0 0.0
  %242 = vmatpush2.msra.mxu0 %v59
  %243 = vmatprep.subr.mxu0 0.0
  %244 = vmatpush2.msra.mxu0 %v58
  %245 = vmatprep.subr.mxu0 0.0
  %246 = vmatpush2.msra.mxu0 %v57
  %247 = vmatprep.subr.mxu0 0.0
  %248 = vmatpush2.msra.mxu0 %v56
  %249 = vmatprep.subr.mxu0 0.0
  %250 = vmatpush2.msra.mxu0 %v55
  %251 = vmatprep.subr.mxu0 0.0
  %252 = vmatpush2.msra.mxu0 %v54
  %253 = vmatprep.mubr.f32.mxu0 %v30
  %254 = vmatmul.mubr.f32.gmra.mxu0 %v29
  %v255 = vpop.f32.mrf.mxu0
  %v256 = vadd.f32 %v187, %v255
  %v257 = vpop.f32.mrf.mxu0
  %258 = vdwg.mxu0
  %259 = vmatprep.subr.mxu0 0.0
  %260 = vmatpush1.msra.mxu0 %v85
  %261 = vmatprep.subr.mxu0 0.0
  %262 = vmatpush1.msra.mxu0 %v84
  %263 = vmatprep.subr.mxu0 0.0
  %264 = vmatpush1.msra.mxu0 %v83
  %265 = vmatprep.subr.mxu0 0.0
  %266 = vmatpush1.msra.mxu0 %v82
  %267 = vmatprep.subr.mxu0 0.0
  %268 = vmatpush1.msra.mxu0 %v81
  %269 = vmatprep.subr.mxu0 0.0
  %270 = vmatpush1.msra.mxu0 %v80
  %271 = vmatprep.subr.mxu0 0.0
  %272 = vmatpush1.msra.mxu0 %v79
  %273 = vmatprep.subr.mxu0 0.0
  %274 = vmatpush1.msra.mxu0 %v78
  %275 = vmatprep.subr.mxu0 0.0
  %276 = vmatpush1.msra.mxu0 %v77
  %277 = vmatprep.subr.mxu0 0.0
  %278 = vmatpush1.msra.mxu0 %v76
  %279 = vmatprep.subr.mxu0 0.0
  %280 = vmatpush1.msra.mxu0 %v75
  %281 = vmatprep.subr.mxu0 0.0
  %282 = vmatpush1.msra.mxu0 %v74
  %283 = vmatprep.subr.mxu0 0.0
  %284 = vmatpush1.msra.mxu0 %v73
  %285 = vmatprep.subr.mxu0 0.0
  %286 = vmatpush1.msra.mxu0 %v72
  %287 = vmatprep.subr.mxu0 0.0
  %288 = vmatpush1.msra.mxu0 %v71
  %289 = vmatprep.subr.mxu0 0.0
  %290 = vmatpush1.msra.mxu0 %v70
  %291 = vmatprep.subr.mxu0 0.0
  %292 = vmatpush2.msra.mxu0 %v101
  %293 = vmatprep.subr.mxu0 0.0
  %294 = vmatpush2.msra.mxu0 %v100
  %295 = vmatprep.subr.mxu0 0.0
  %296 = vmatpush2.msra.mxu0 %v99
  %297 = vmatprep.subr.mxu0 0.0
  %298 = vmatpush2.msra.mxu0 %v98
  %299 = vmatprep.subr.mxu0 0.0
  %300 = vmatpush2.msra.mxu0 %v97
  %301 = vmatprep.subr.mxu0 0.0
  %302 = vmatpush2.msra.mxu0 %v96
  %303 = vmatprep.subr.mxu0 0.0
  %304 = vmatpush2.msra.mxu0 %v95
  %305 = vmatprep.subr.mxu0 0.0
  %306 = vmatpush2.msra.mxu0 %v94
  %307 = vmatprep.subr.mxu0 0.0
  %308 = vmatpush2.msra.mxu0 %v93
  %309 = vmatprep.subr.mxu0 0.0
  %310 = vmatpush2.msra.mxu0 %v92
  %311 = vmatprep.subr.mxu0 0.0
  %312 = vmatpush2.msra.mxu0 %v91
  %313 = vmatprep.subr.mxu0 0.0
  %314 = vmatpush2.msra.mxu0 %v90
  %315 = vmatprep.subr.mxu0 0.0
  %316 = vmatpush2.msra.mxu0 %v89
  %317 = vmatprep.subr.mxu0 0.0
  %318 = vmatpush2.msra.mxu0 %v88
  %319 = vmatprep.subr.mxu0 0.0
  %320 = vmatpush2.msra.mxu0 %v87
  %321 = vmatprep.subr.mxu0 0.0
  %322 = vmatpush2.msra.mxu0 %v86
  %323 = vmatprep.mubr.f32.mxu0 %v32
  %324 = vmatmul.mubr.f32.gmra.mxu0 %v31
  %v325 = vpop.f32.mrf.mxu0
  %v326 = vadd.f32 %v256, %v325
  %v327 = vpop.f32.mrf.mxu0
  %328 = vdwg.mxu0
  %329 = vmatprep.subr.mxu0 0.0
  %330 = vmatpush1.msra.mxu0 %v117
  %331 = vmatprep.subr.mxu0 0.0
  %332 = vmatpush1.msra.mxu0 %v116
  %333 = vmatprep.subr.mxu0 0.0
  %334 = vmatpush1.msra.mxu0 %v115
  %335 = vmatprep.subr.mxu0 0.0
  %336 = vmatpush1.msra.mxu0 %v114
  %337 = vmatprep.subr.mxu0 0.0
  %338 = vmatpush1.msra.mxu0 %v113
  %339 = vmatprep.subr.mxu0 0.0
  %340 = vmatpush1.msra.mxu0 %v112
  %341 = vmatprep.subr.mxu0 0.0
  %342 = vmatpush1.msra.mxu0 %v111
  %343 = vmatprep.subr.mxu0 0.0
  %344 = vmatpush1.msra.mxu0 %v110
  %345 = vmatprep.subr.mxu0 0.0
  %346 = vmatpush1.msra.mxu0 %v109
  %347 = vmatprep.subr.mxu0 0.0
  %348 = vmatpush1.msra.mxu0 %v108
  %349 = vmatprep.subr.mxu0 0.0
  %350 = vmatpush1.msra.mxu0 %v107
  %351 = vmatprep.subr.mxu0 0.0
  %352 = vmatpush1.msra.mxu0 %v106
  %353 = vmatprep.subr.mxu0 0.0
  %354 = vmatpush1.msra.mxu0 %v105
  %355 = vmatprep.subr.mxu0 0.0
  %356 = vmatpush1.msra.mxu0 %v104
  %357 = vmatprep.subr.mxu0 0.0
  %358 = vmatpush1.msra.mxu0 %v103
  %359 = vmatprep.subr.mxu0 0.0
  %360 = vmatpush1.msra.mxu0 %v102
  %361 = vmatprep.subr.mxu0 0.0
  %362 = vmatpush2.msra.mxu0 %v133
  %363 = vmatprep.subr.mxu0 0.0
  %364 = vmatpush2.msra.mxu0 %v132
  %365 = vmatprep.subr.mxu0 0.0
  %366 = vmatpush2.msra.mxu0 %v131
  %367 = vmatprep.subr.mxu0 0.0
  %368 = vmatpush2.msra.mxu0 %v130
  %369 = vmatprep.subr.mxu0 0.0
  %370 = vmatpush2.msra.mxu0 %v129
  %371 = vmatprep.subr.mxu0 0.0
  %372 = vmatpush2.msra.mxu0 %v128
  %373 = vmatprep.subr.mxu0 0.0
  %374 = vmatpush2.msra.mxu0 %v127
  %375 = vmatprep.subr.mxu0 0.0
  %376 = vmatpush2.msra.mxu0 %v126
  %377 = vmatprep.subr.mxu0 0.0
  %378 = vmatpush2.msra.mxu0 %v125
  %379 = vmatprep.subr.mxu0 0.0
  %380 = vmatpush2.msra.mxu0 %v124
  %381 = vmatprep.subr.mxu0 0.0
  %382 = vmatpush2.msra.mxu0 %v123
  %383 = vmatprep.subr.mxu0 0.0
  %384 = vmatpush2.msra.mxu0 %v122
  %385 = vmatprep.subr.mxu0 0.0
  %386 = vmatpush2.msra.mxu0 %v121
  %387 = vmatprep.subr.mxu0 0.0
  %388 = vmatpush2.msra.mxu0 %v120
  %389 = vmatprep.subr.mxu0 0.0
  %390 = vmatpush2.msra.mxu0 %v119
  %391 = vmatprep.subr.mxu0 0.0
  %392 = vmatpush2.msra.mxu0 %v118
  %393 = vmatprep.mubr.f32.mxu0 %v34
  %394 = vmatmul.mubr.f32.gmra.mxu0 %v33
  %v395 = vpop.f32.mrf.mxu0
  %v396 = vadd.f32 %v326, %v395
  %v397 = vpop.f32.mrf.mxu0
  %398 = vdwg.mxu0
  %399 = vmatprep.subr.mxu0 0.0
  %400 = vmatpush1.msra.mxu0 %v149
  %401 = vmatprep.subr.mxu0 0.0
  %402 = vmatpush1.msra.mxu0 %v148
  %403 = vmatprep.subr.mxu0 0.0
  %404 = vmatpush1.msra.mxu0 %v147
  %405 = vmatprep.subr.mxu0 0.0
  %406 = vmatpush1.msra.mxu0 %v146
  %407 = vmatprep.subr.mxu0 0.0
  %408 = vmatpush1.msra.mxu0 %v145
  %409 = vmatprep.subr.mxu0 0.0
  %410 = vmatpush1.msra.mxu0 %v144
  %411 = vmatprep.subr.mxu0 0.0
  %412 = vmatpush1.msra.mxu0 %v143
  %413 = vmatprep.subr.mxu0 0.0
  %414 = vmatpush1.msra.mxu0 %v142
  %415 = vmatprep.subr.mxu0 0.0
  %416 = vmatpush1.msra.mxu0 %v141
  %417 = vmatprep.subr.mxu0 0.0
  %418 = vmatpush1.msra.mxu0 %v140
  %419 = vmatprep.subr.mxu0 0.0
  %420 = vmatpush1.msra.mxu0 %v139
  %421 = vmatprep.subr.mxu0 0.0
  %422 = vmatpush1.msra.mxu0 %v138
  %423 = vmatprep.subr.mxu0 0.0
  %424 = vmatpush1.msra.mxu0 %v137
  %425 = vmatprep.subr.mxu0 0.0
  %426 = vmatpush1.msra.mxu0 %v136
  %427 = vmatprep.subr.mxu0 0.0
  %428 = vmatpush1.msra.mxu0 %v135
  %429 = vmatprep.subr.mxu0 0.0
  %430 = vmatpush1.msra.mxu0 %v134
  %431 = vmatprep.subr.mxu0 0.0
  %432 = vmatpush2.msra.mxu0 %v165
  %433 = vmatprep.subr.mxu0 0.0
  %434 = vmatpush2.msra.mxu0 %v164
  %435 = vmatprep.subr.mxu0 0.0
  %436 = vmatpush2.msra.mxu0 %v163
  %437 = vmatprep.subr.mxu0 0.0
  %438 = vmatpush2.msra.mxu0 %v162
  %439 = vmatprep.subr.mxu0 0.0
  %440 = vmatpush2.msra.mxu0 %v161
  %441 = vmatprep.subr.mxu0 0.0
  %442 = vmatpush2.msra.mxu0 %v160
  %443 = vmatprep.subr.mxu0 0.0
  %444 = vmatpush2.msra.mxu0 %v159
  %445 = vmatprep.subr.mxu0 0.0
  %446 = vmatpush2.msra.mxu0 %v158
  %447 = vmatprep.subr.mxu0 0.0
  %448 = vmatpush2.msra.mxu0 %v157
  %449 = vmatprep.subr.mxu0 0.0
  %450 = vmatpush2.msra.mxu0 %v156
  %451 = vmatprep.subr.mxu0 0.0
  %452 = vmatpush2.msra.mxu0 %v155
  %453 = vmatprep.subr.mxu0 0.0
  %454 = vmatpush2.msra.mxu0 %v154
  %455 = vmatprep.subr.mxu0 0.0
  %456 = vmatpush2.msra.mxu0 %v153
  %457 = vmatprep.subr.mxu0 0.0
  %458 = vmatpush2.msra.mxu0 %v152
  %459 = vmatprep.subr.mxu0 0.0
  %460 = vmatpush2.msra.mxu0 %v151
  %461 = vmatprep.subr.mxu0 0.0
  %462 = vmatpush2.msra.mxu0 %v150
  %463 = vmatprep.mubr.f32.mxu0 %v36
  %464 = vmatmul.mubr.f32.gmra.mxu0 %v35
  %v465 = vpop.f32.mrf.mxu0
  %v466 = vadd.f32 %v396, %v465
  %v467 = vpop.f32.mrf.mxu0
  %468 = vdwg.mxu0
  %469 = vmatprep.subr.mxu0 0.0
  %470 = vmatpush1.msra.mxu0 %v181
  %471 = vmatprep.subr.mxu0 0.0
  %472 = vmatpush1.msra.mxu0 %v180
  %473 = vmatprep.subr.mxu0 0.0
  %474 = vmatpush1.msra.mxu0 %v179
  %475 = vmatprep.subr.mxu0 0.0
  %476 = vmatpush1.msra.mxu0 %v178
  %477 = vmatprep.subr.mxu0 0.0
  %478 = vmatpush1.msra.mxu0 %v177
  %479 = vmatprep.subr.mxu0 0.0
  %480 = vmatpush1.msra.mxu0 %v176
  %481 = vmatprep.subr.mxu0 0.0
  %482 = vmatpush1.msra.mxu0 %v175
  %483 = vmatprep.subr.mxu0 0.0
  %484 = vmatpush1.msra.mxu0 %v174
  %485 = vmatprep.subr.mxu0 0.0
  %486 = vmatpush1.msra.mxu0 %v173
  %487 = vmatprep.subr.mxu0 0.0
  %488 = vmatpush1.msra.mxu0 %v172
  %489 = vmatprep.subr.mxu0 0.0
  %490 = vmatpush1.msra.mxu0 %v171
  %491 = vmatprep.subr.mxu0 0.0
  %492 = vmatpush1.msra.mxu0 %v170
  %493 = vmatprep.subr.mxu0 0.0
  %494 = vmatpush1.msra.mxu0 %v169
  %495 = vmatprep.subr.mxu0 0.0
  %496 = vmatpush1.msra.mxu0 %v168
  %497 = vmatprep.subr.mxu0 0.0
  %498 = vmatpush1.msra.mxu0 %v167
  %499 = vmatprep.subr.mxu0 0.0
  %500 = vmatpush1.msra.mxu0 %v166
  %501 = vmatprep.subr.mxu0 0.0
  %502 = vmatpush2.msra.mxu0 0.0
  %503 = vmatprep.subr.mxu0 0.0
  %504 = vmatpush2.msra.mxu0 0.0
  %505 = vmatprep.subr.mxu0 0.0
  %506 = vmatpush2.msra.mxu0 0.0
  %507 = vmatprep.subr.mxu0 0.0
  %508 = vmatpush2.msra.mxu0 0.0
  %509 = vmatprep.subr.mxu0 0.0
  %510 = vmatpush2.msra.mxu0 0.0
  %511 = vmatprep.subr.mxu0 0.0
  %512 = vmatpush2.msra.mxu0 0.0
  %513 = vmatprep.subr.mxu0 0.0
  %514 = vmatpush2.msra.mxu0 0.0
  %515 = vmatprep.subr.mxu0 0.0
  %516 = vmatpush2.msra.mxu0 0.0
  %517 = vmatprep.subr.mxu0 0.0
  %518 = vmatpush2.msra.mxu0 0.0
  %519 = vmatprep.subr.mxu0 0.0
  %520 = vmatpush2.msra.mxu0 0.0
  %521 = vmatprep.subr.mxu0 0.0
  %522 = vmatpush2.msra.mxu0 0.0
  %523 = vmatprep.subr.mxu0 0.0
  %524 = vmatpush2.msra.mxu0 0.0
  %525 = vmatprep.subr.mxu0 0.0
  %526 = vmatpush2.msra.mxu0 0.0
  %527 = vmatprep.subr.mxu0 0.0
  %528 = vmatpush2.msra.mxu0 0.0
  %529 = vmatprep.subr.mxu0 0.0
  %530 = vmatpush2.msra.mxu0 0.0
  %531 = vmatprep.subr.mxu0 0.0
  %532 = vmatpush2.msra.mxu0 0.0
  %533 = vmatprep.mubr.f32.mxu0 0.0
  %534 = vmatmul.mubr.f32.gmra.mxu0 %v37
  %v535 = vpop.f32.mrf.mxu0
  %v536 = vadd.f32 %v466, %v535
  %v537 = vpop.f32.mrf.mxu0
  %538 = vdwg.mxu0
  %v539 = vld [vmem:[%s3] sm:$0x1]
  %v540 = vld [vmem:[%s4] sm:$0x1]
  %v541 = vld [vmem:[%s5] sm:$0x1]
  %v542 = vsub.f32 0.0, %v536
  %v543 = vmul.f32 %v542, 1.442695
  %v544 = vpow.pop %v543
  %v545 = vadd.f32 %v544, 1.0
  %v546 = vrcp.pop %v545
  %vm547 = vcmp.ne.f32.partialorder %v539, 0.0
  %v549 = vlaneseq
  %v550 = vshrl.u32 %v549, 7
  %v551 = vsub.s32 0, %v550
  %v552 = vrot.slane %v540, %v551
  %v554 = vmul.f32 %v536, %v552
  %v556 = vlaneseq
  %v557 = vshrl.u32 %v556, 7
  %v558 = vsub.s32 0, %v557
  %v559 = vrot.slane %v541, %v558
  %v561 = vadd.f32 %v554, %v559
  %v562 = vsel %vm547, 1, 0
  %v563 = vlaneseq
  %v564 = vshrl.u32 %v563, 7
  %v565 = vsub.s32 0, %v564
  %v566 = vrot.slane %v562, %v565
  %vm567 = vcmp.eq.s32.totalorder %v566, 1
  %v568 = vsel %vm567, %v561, %v546
  %v569 = vld [vmem:[%s6] sm:$0xff]
  %v570 = vld [vmem:[%s6 + $0x8] sm:$0xff]
  %v571 = vld [vmem:[%s6 + $0x10] sm:$0xff]
  %v572 = vld [vmem:[%s6 + $0x18] sm:$0xff]
  %v573 = vld [vmem:[%s6 + $0x20] sm:$0xff]
  %v574 = vld [vmem:[%s6 + $0x28] sm:$0xff]
  %v575 = vld [vmem:[%s6 + $0x30] sm:$0xff]
  %v576 = vld [vmem:[%s6 + $0x38] sm:$0xff]
  %v577 = vld [vmem:[%s6 + $0x40] sm:$0xff]
  %v578 = vld [vmem:[%s6 + $0x48] sm:$0xff]
  %v579 = vld [vmem:[%s6 + $0x50] sm:$0xff]
  %v580 = vld [vmem:[%s6 + $0x58] sm:$0xff]
  %v581 = vld [vmem:[%s6 + $0x60] sm:$0xff]
  %v582 = vld [vmem:[%s6 + $0x68] sm:$0xff]
  %v583 = vld [vmem:[%s6 + $0x70] sm:$0xff]
  %v584 = vld [vmem:[%s6 + $0x78] sm:$0xff]
  %v585 = vld [vmem:[%s7] sm:$0x1]
  %v587 = vlaneseq
  %v588 = vshrl.u32 %v587, 7
  %v589 = vsub.s32 0, %v588
  %v590 = vrot.slane %v585, %v589
  %592 = vmatprep.subr.mxu0 0.0
  %593 = vmatpush1.msra.mxu0 %v584
  %594 = vmatprep.subr.mxu0 0.0
  %595 = vmatpush1.msra.mxu0 %v583
  %596 = vmatprep.subr.mxu0 0.0
  %597 = vmatpush1.msra.mxu0 %v582
  %598 = vmatprep.subr.mxu0 0.0
  %599 = vmatpush1.msra.mxu0 %v581
  %600 = vmatprep.subr.mxu0 0.0
  %601 = vmatpush1.msra.mxu0 %v580
  %602 = vmatprep.subr.mxu0 0.0
  %603 = vmatpush1.msra.mxu0 %v579
  %604 = vmatprep.subr.mxu0 0.0
  %605 = vmatpush1.msra.mxu0 %v578
  %606 = vmatprep.subr.mxu0 0.0
  %607 = vmatpush1.msra.mxu0 %v577
  %608 = vmatprep.subr.mxu0 0.0
  %609 = vmatpush1.msra.mxu0 %v576
  %610 = vmatprep.subr.mxu0 0.0
  %611 = vmatpush1.msra.mxu0 %v575
  %612 = vmatprep.subr.mxu0 0.0
  %613 = vmatpush1.msra.mxu0 %v574
  %614 = vmatprep.subr.mxu0 0.0
  %615 = vmatpush1.msra.mxu0 %v573
  %616 = vmatprep.subr.mxu0 0.0
  %617 = vmatpush1.msra.mxu0 %v572
  %618 = vmatprep.subr.mxu0 0.0
  %619 = vmatpush1.msra.mxu0 %v571
  %620 = vmatprep.subr.mxu0 0.0
  %621 = vmatpush1.msra.mxu0 %v570
  %622 = vmatprep.subr.mxu0 0.0
  %623 = vmatpush1.msra.mxu0 %v569
  %624 = vmatprep.subr.mxu0 0.0
  %625 = vmatpush2.msra.mxu0 0.0
  %626 = vmatprep.subr.mxu0 0.0
  %627 = vmatpush2.msra.mxu0 0.0
  %628 = vmatprep.subr.mxu0 0.0
  %629 = vmatpush2.msra.mxu0 0.0
  %630 = vmatprep.subr.mxu0 0.0
  %631 = vmatpush2.msra.mxu0 0.0
  %632 = vmatprep.subr.mxu0 0.0
  %633 = vmatpush2.msra.mxu0 0.0
  %634 = vmatprep.subr.mxu0 0.0
  %635 = vmatpush2.msra.mxu0 0.0
  %636 = vmatprep.subr.mxu0 0.0
  %637 = vmatpush2.msra.mxu0 0.0
  %638 = vmatprep.subr.mxu0 0.0
  %639 = vmatpush2.msra.mxu0 0.0
  %640 = vmatprep.subr.mxu0 0.0
  %641 = vmatpush2.msra.mxu0 0.0
  %642 = vmatprep.subr.mxu0 0.0
  %643 = vmatpush2.msra.mxu0 0.0
  %644 = vmatprep.subr.mxu0 0.0
  %645 = vmatpush2.msra.mxu0 0.0
  %646 = vmatprep.subr.mxu0 0.0
  %647 = vmatpush2.msra.mxu0 0.0
  %648 = vmatprep.subr.mxu0 0.0
  %649 = vmatpush2.msra.mxu0 0.0
  %650 = vmatprep.subr.mxu0 0.0
  %651 = vmatpush2.msra.mxu0 0.0
  %652 = vmatprep.subr.mxu0 0.0
  %653 = vmatpush2.msra.mxu0 0.0
  %654 = vmatprep.subr.mxu0 0.0
  %655 = vmatpush2.msra.mxu0 0.0
  %656 = vmatprep.mubr.f32.mxu0 0.0
  %657 = vmatmul.mubr.f32.gmra.mxu0 %v568
  %v658 = vpop.f32.mrf.mxu0
  %v659 = vadd.f32 %v590, %v658
  %v660 = vpop.f32.mrf.mxu0
  %661 = vdwg.mxu0
  %662 = vst [vmem:[%s8] sm:$0xff] %v659
  // Predicated region
  $region34: #{forward.5} parent=0 // pred_check
    _
  $region35: #{forward.5} parent=0 // pred_check_branch
    %664 = sbr.rel (0) target = $region37
  $region36: #{forward.5} parent=0 // pred_region
    _
  $region37: #{forward.5} parent=0 // pred_fallthru
    _
  // Predicated region
  $region38: #{forward.5} parent=0 // pred_check
    _
  $region39: #{forward.5} parent=0 // pred_check_branch
    %666 = sbr.rel (0) target = $region41
  $region40: #{forward.5} parent=0 // pred_region
    _
  $region41: #{forward.5} parent=0 // pred_fallthru
    _

</llo_original>
